<compile_context>
chip_gen: v7x
topology: tpu7x:2x2x1
jax: 0.10.0
libtpu: 0.0.40
codegen_flags: <defaults>
</compile_context>

<pallas_src>
import functools

import numpy as np
import jax
import jax.numpy as jnp
from jax.experimental import pallas as pl
from jax.experimental.pallas import tpu as pltpu

LANE = 128  # pad feature / class dims to a full lane width (same on v5e/v6e/v7x)


def _round_up(x, m):
    return (x + m - 1) // m * m


# ------------------------------ fused TextCNN kernel ------------------------------

def _textcnn_fused_kernel(x_ref, wconv_ref, bconv_ref, mask_ref, wfc_ref, bfc_ref,
                          o_ref, *, n_b, seq_len, emb_dim, k_max):
    # x_ref:      (n_b, L+k_max-1, E) bf16  per-sequence zero-padded embedded tokens
    # wconv_ref:  (k_max*E, Fp)       bf16  all conv branches packed along lanes (im2col layout)
    # bconv_ref:  (1, Fp)             f32   packed conv biases (zeros in pad lanes)
    # mask_ref:   (L, Fp)             f32   1.0 where position p is a valid conv output for that lane
    # wfc_ref:    (Fp, NCp)           bf16  fc weight (zero rows for pad lanes)
    # bfc_ref:    (1, NCp)            f32   fc bias (zeros in pad lanes)
    # o_ref:      (n_b, NCp)          f32   lane-dense logits block (sliced outside)
    f_pad = wconv_ref.shape[1]
    x = x_ref[...]                                                   # (n_b, L_pad, E) bf16

    # Lane-dense im2col: K = k_max*E per row -> ONE MXU dot instead of k_max K=E dots.
    lhs = jnp.concatenate([x[:, j:j + seq_len, :] for j in range(k_max)], axis=-1)
    lhs = lhs.reshape(n_b * seq_len, k_max * emb_dim)                # (n_b*L, k_max*E) bf16

    acc = jnp.dot(lhs, wconv_ref[...], preferred_element_type=jnp.float32)   # (n_b*L, Fp) f32
    acc = jnp.maximum(acc + bconv_ref[...], 0.0)                     # conv bias + ReLU

    # Masked global max-pool per branch, vectorized over the whole tile.
    # Invalid tail positions (p > L - k_i, which also read zero-padded rows) are zeroed;
    # ReLU output >= 0 so a zeroed position can never beat a valid maximum.
    acc = acc.reshape(n_b, seq_len, f_pad) * mask_ref[...][None, :, :]
    pooled = jnp.max(acc, axis=1)                                    # (n_b, Fp) f32

    # Fused fc on the in-vreg pooled features; one lane-dense (n_b, NCp) store.
    o_ref[...] = (jnp.dot(pooled.astype(wfc_ref.dtype), wfc_ref[...],
                          preferred_element_type=jnp.float32) + bfc_ref[...])


def textcnn_fused_forward(x_emb, packed):
    """x_emb: (B, L, E) f32 embedded tokens; packed: output of pack_textcnn_params."""
    B, L, E = x_emb.shape
    assert L == packed["seq_len"], "packed mask/layout was built for a different seq_len"
    k_max = packed["k_max"]
    wconv, bconv, mask = packed["wconv"], packed["bconv"], packed["mask"]
    wfc, bfc = packed["wfc"], packed["bfc"]
    f_pad, nc_pad = wconv.shape[1], wfc.shape[1]
    l_pad = L + k_max - 1

    # Batch tile: >=256 matmul rows per grid step (fills v6e/v7x MXU M; >=128 on v5e),
    # a multiple of 8 sequences (sublane-aligned output blocks), bounded by a
    # conservative per-step working-set budget so it is safe on v7x's 64 MiB VMEM.
    n_b = _round_up(max(1, pl.cdiv(256, L)), 8)

    def _step_bytes(nb):
        return (2 * nb * l_pad * E * 2                        # double-buffered bf16 x tile
                + nb * L * (k_max * E * 2 + f_pad * 4)        # im2col lhs (bf16) + f32 acc
                + 2 * nb * nc_pad * 4)                        # double-buffered f32 out tile

    budget = 24 * 1024 * 1024
    while n_b > 8 and _step_bytes(n_b) > budget:
        n_b -= 8
    n_b = min(n_b, _round_up(B, 8))
    b_pad = _round_up(B, n_b)
    num_tiles = b_pad // n_b

    # Per-sequence zero padding (k_max-1 rows) keeps every tap shift inside its own tile;
    # pad the batch so the grid divides evenly. bf16 halves HBM/VMEM traffic of the x slab.
    x = jnp.pad(x_emb, ((0, b_pad - B), (0, k_max - 1), (0, 0))).astype(jnp.bfloat16)

    kernel = functools.partial(_textcnn_fused_kernel, n_b=n_b, seq_len=L,
                               emb_dim=E, k_max=k_max)
    const = pl.Buffered(1)  # grid-invariant operands: fetched once, single-buffered

    out = pl.pallas_call(
        kernel,
        out_shape=jax.ShapeDtypeStruct((b_pad, nc_pad), jnp.float32),
        grid=(num_tiles,),
        in_specs=[
            pl.BlockSpec((n_b, l_pad, E), lambda i: (i, 0, 0)),
            pl.BlockSpec((k_max * E, f_pad), lambda i: (0, 0), pipeline_mode=const),
            pl.BlockSpec((1, f_pad), lambda i: (0, 0), pipeline_mode=const),
            pl.BlockSpec((L, f_pad), lambda i: (0, 0), pipeline_mode=const),
            pl.BlockSpec((f_pad, nc_pad), lambda i: (0, 0), pipeline_mode=const),
            pl.BlockSpec((1, nc_pad), lambda i: (0, 0), pipeline_mode=const),
        ],
        out_specs=pl.BlockSpec((n_b, nc_pad), lambda i: (i, 0)),
        compiler_params=pltpu.CompilerParams(
            dimension_semantics=("parallel",),          # shards batch tiles across v7x's 2 TCs
            vmem_limit_bytes=48 * 1024 * 1024,          # explicit, with headroom on v7x
        ),
    )(x, wconv, bconv, mask, wfc, bfc)
    return out[:B, :packed["num_classes"]]


# ------------------------------ params (torch layout) ------------------------------

def init_textcnn_params(key, vocab_size, embedding_dim, num_classes, kernel_sizes, channels):
    keys = jax.random.split(key, 2 * len(kernel_sizes) + 3)
    params = {
        "embedding": 0.1 * jax.random.normal(keys[0], (vocab_size, embedding_dim), jnp.float32),
        "convs": [],
    }
    for i, k in enumerate(kernel_sizes):
        w = 0.1 * jax.random.normal(keys[1 + 2 * i], (channels, embedding_dim, k), jnp.float32)
        b = 0.1 * jax.random.normal(keys[2 + 2 * i], (channels,), jnp.float32)
        params["convs"].append((w, b))  # torch Conv1d layout (C, E, k)
    feat = len(kernel_sizes) * channels
    params["fc_w"] = 0.1 * jax.random.normal(keys[-2], (num_classes, feat), jnp.float32)
    params["fc_b"] = 0.1 * jax.random.normal(keys[-1], (num_classes,), jnp.float32)
    return params


def pack_textcnn_params(params, seq_len):
    """One-time re-layout of torch-style weights into the fused kernel's packed/padded form."""
    convs = params["convs"]
    kernel_sizes = tuple(int(w.shape[2]) for (w, _) in convs)
    channels = int(convs[0][0].shape[0])
    emb_dim = int(convs[0][0].shape[1])
    k_max = max(kernel_sizes)
    assert seq_len >= k_max, "seq_len must be >= the largest conv kernel size"
    feat = len(convs) * channels
    f_pad = _round_up(feat, LANE)
    num_classes = int(params["fc_w"].shape[0])
    nc_pad = _round_up(num_classes, LANE)

    wconv = np.zeros((k_max * emb_dim, f_pad), np.float32)   # im2col layout: row = j*E + e
    bconv = np.zeros((1, f_pad), np.float32)
    mask = np.zeros((seq_len, f_pad), np.float32)
    for i, ((w, b), k) in enumerate(zip(convs, kernel_sizes)):
        w_np = np.asarray(w)  # (C, E, k)
        c0 = i * channels
        for j in range(k):
            wconv[j * emb_dim:(j + 1) * emb_dim, c0:c0 + channels] = w_np[:, :, j].T
        bconv[0, c0:c0 + channels] = np.asarray(b)
        mask[:seq_len - k + 1, c0:c0 + channels] = 1.0  # valid conv output positions

    # Required invariant: taps j >= k_i are zero in branch i's lanes (padded-tail reads
    # then contribute nothing, so the zero-mask + ReLU>=0 max-pool is exact).
    for i, k in enumerate(kernel_sizes):
        c0 = i * channels
        assert not wconv[k * emb_dim:, c0:c0 + channels].any()

    wfc = np.zeros((f_pad, nc_pad), np.float32)
    wfc[:feat, :num_classes] = np.asarray(params["fc_w"]).T  # pad lanes get zero weight
    bfc = np.zeros((1, nc_pad), np.float32)
    bfc[0, :num_classes] = np.asarray(params["fc_b"])

    return {
        "wconv": jnp.asarray(wconv, dtype=jnp.bfloat16),
        "bconv": jnp.asarray(bconv),
        "mask": jnp.asarray(mask),
        "wfc": jnp.asarray(wfc, dtype=jnp.bfloat16),
        "bfc": jnp.asarray(bfc),
        "k_max": k_max, "num_classes": num_classes, "seq_len": seq_len,
    }


# ------------------------------------ forward ------------------------------------

def textcnn_forward(params, packed, tokens):
    # Embedding lookup is a gather -> plain JAX.
    # TODO(synk): fold the embedding gather into the kernel via scalar-prefetched token ids
    # + row-gather DMA to avoid materializing (B, L, E) in HBM for large batches.
    emb = jnp.take(params["embedding"], tokens, axis=0)  # (B, L, E) f32
    # TODO(synk): dropout(p=0.5) implemented as inference-mode identity (training RNG mask omitted).
    return textcnn_fused_forward(emb, packed)            # (B, num_classes)


def textcnn_reference(params, tokens):
    """Pure-JAX f32 reference (matches the PyTorch module semantics) for a correctness check."""
    hi = jax.lax.Precision.HIGHEST
    emb = jnp.take(params["embedding"], tokens, axis=0)   # (B, L, E)
    pooled = []
    for (w, b) in params["convs"]:
        _, _, k = w.shape
        l_out = emb.shape[1] - k + 1
        acc = None
        for j in range(k):
            term = jnp.einsum("ble,ec->blc", emb[:, j:j + l_out, :], w[:, :, j].T, precision=hi)
            acc = term if acc is None else acc + term
        acc = jax.nn.relu(acc + b[None, None, :])
        pooled.append(jnp.max(acc, axis=1))
    feat = jnp.concatenate(pooled, axis=1)
    return jnp.dot(feat, params["fc_w"].T, precision=hi) + params["fc_b"]


# -------------------------------------- main --------------------------------------

if __name__ == "__main__":
    # Small, module-consistent config (k_max*E = 256 fills the MXU contraction depth).
    vocab_size = 64
    embedding_dim = 32
    num_classes = 2
    kernel_sizes = (2, 4, 8)
    channels = 32
    batch = 32
    seq_len = 16

    key = jax.random.PRNGKey(0)
    pkey, tkey = jax.random.split(key)
    params = init_textcnn_params(pkey, vocab_size, embedding_dim, num_classes,
                                 kernel_sizes, channels)
    packed = pack_textcnn_params(params, seq_len)  # one-time weight re-layout / bf16 cast
    tokens = jax.random.randint(tkey, (batch, seq_len), 0, vocab_size, dtype=jnp.int32)

    out = textcnn_forward(params, packed, tokens)
    jax.block_until_ready(out)
    assert out.shape == (batch, num_classes)

    ref = textcnn_reference(params, tokens)
    max_diff = float(jnp.max(jnp.abs(out - ref)))
    # bf16 inputs/weights with f32 accumulation -> allow bf16-level tolerance vs f32 reference.
    assert jnp.allclose(out, ref, rtol=2e-2, atol=2e-2), f"mismatch vs reference: {max_diff}"

    print("KERNEL_OK")
</pallas_src>

<mosaic_0001>
module attributes {stable_mosaic.version = 11 : i64} {
  func.func @_textcnn_fused_kernel(%arg0: i32, %arg1: memref<16x23x32xbf16, #tpu.memory_space<vmem>>, %arg2: memref<256x128xbf16, #tpu.memory_space<vmem>>, %arg3: memref<1x128xf32, #tpu.memory_space<vmem>>, %arg4: memref<16x128xf32, #tpu.memory_space<vmem>>, %arg5: memref<128x128xbf16, #tpu.memory_space<vmem>>, %arg6: memref<1x128xf32, #tpu.memory_space<vmem>>, %arg7: memref<16x128xf32, #tpu.memory_space<vmem>>) attributes {dimension_semantics = [#tpu.dimension_semantics<parallel>], iteration_bounds = array<i64: 2>, scalar_prefetch = 0 : i64, scratch_operands = 0 : i64, tpu.core_type = #tpu.core_type<tc>, window_params = [{transform_indices = @transform_0, window_bounds = array<i64: 16, 23, 32>}, {pipeline_mode = #tpu.pipeline_mode<synchronous>, transform_indices = @transform_1, window_bounds = array<i64: 256, 128>}, {pipeline_mode = #tpu.pipeline_mode<synchronous>, transform_indices = @transform_2, window_bounds = array<i64: 1, 128>}, {pipeline_mode = #tpu.pipeline_mode<synchronous>, transform_indices = @transform_3, window_bounds = array<i64: 16, 128>}, {pipeline_mode = #tpu.pipeline_mode<synchronous>, transform_indices = @transform_4, window_bounds = array<i64: 128, 128>}, {pipeline_mode = #tpu.pipeline_mode<synchronous>, transform_indices = @transform_5, window_bounds = array<i64: 1, 128>}, {transform_indices = @transform_6, window_bounds = array<i64: 16, 128>}]} {
    %c0 = arith.constant 0 : index
    %c0_0 = arith.constant 0 : index
    %c0_1 = arith.constant 0 : index
    %0 = vector.load %arg1[%c0, %c0_0, %c0_1] : memref<16x23x32xbf16, #tpu.memory_space<vmem>>, vector<16x23x32xbf16>
    %1 = vector.extract_strided_slice %0 {offsets = [0, 0, 0], sizes = [16, 16, 32], strides = [1, 1, 1]} : vector<16x23x32xbf16> to vector<16x16x32xbf16>
    %2 = vector.extract_strided_slice %0 {offsets = [0, 1, 0], sizes = [16, 16, 32], strides = [1, 1, 1]} : vector<16x23x32xbf16> to vector<16x16x32xbf16>
    %3 = vector.extract_strided_slice %0 {offsets = [0, 2, 0], sizes = [16, 16, 32], strides = [1, 1, 1]} : vector<16x23x32xbf16> to vector<16x16x32xbf16>
    %4 = vector.extract_strided_slice %0 {offsets = [0, 3, 0], sizes = [16, 16, 32], strides = [1, 1, 1]} : vector<16x23x32xbf16> to vector<16x16x32xbf16>
    %5 = vector.extract_strided_slice %0 {offsets = [0, 4, 0], sizes = [16, 16, 32], strides = [1, 1, 1]} : vector<16x23x32xbf16> to vector<16x16x32xbf16>
    %6 = vector.extract_strided_slice %0 {offsets = [0, 5, 0], sizes = [16, 16, 32], strides = [1, 1, 1]} : vector<16x23x32xbf16> to vector<16x16x32xbf16>
    %7 = vector.extract_strided_slice %0 {offsets = [0, 6, 0], sizes = [16, 16, 32], strides = [1, 1, 1]} : vector<16x23x32xbf16> to vector<16x16x32xbf16>
    %8 = vector.extract_strided_slice %0 {offsets = [0, 7, 0], sizes = [16, 16, 32], strides = [1, 1, 1]} : vector<16x23x32xbf16> to vector<16x16x32xbf16>
    %9 = tpu.concatenate %1, %2, %3, %4, %5, %6, %7, %8 in 2 : vector<16x16x32xbf16>, vector<16x16x32xbf16>, vector<16x16x32xbf16>, vector<16x16x32xbf16>, vector<16x16x32xbf16>, vector<16x16x32xbf16>, vector<16x16x32xbf16>, vector<16x16x32xbf16> -> vector<16x16x256xbf16>
    %10 = vector.shape_cast %9 : vector<16x16x256xbf16> to vector<256x256xbf16>
    %c0_2 = arith.constant 0 : index
    %c0_3 = arith.constant 0 : index
    %11 = vector.load %arg2[%c0_2, %c0_3] : memref<256x128xbf16, #tpu.memory_space<vmem>>, vector<256x128xbf16>
    %cst = arith.constant dense<0.000000e+00> : vector<256x128xf32>
    %12 = tpu.matmul %10, %11, %cst {dimension_numbers = #tpu.dot_dimension_numbers<[1], [0], [0], [1], [0, 0, 1, 1], [], []>} : vector<256x256xbf16>, vector<256x128xbf16>, vector<256x128xf32> -> vector<256x128xf32>
    %c0_4 = arith.constant 0 : index
    %c0_5 = arith.constant 0 : index
    %13 = vector.load %arg3[%c0_4, %c0_5] : memref<1x128xf32, #tpu.memory_space<vmem>>, vector<1x128xf32>
    %14 = vector.broadcast %13 : vector<1x128xf32> to vector<256x128xf32>
    %15 = arith.addf %12, %14 : vector<256x128xf32>
    %cst_6 = arith.constant 0.000000e+00 : f32
    %16 = vector.broadcast %cst_6 : f32 to vector<256x128xf32>
    %17 = arith.maximumf %15, %16 : vector<256x128xf32>
    %18 = vector.shape_cast %17 : vector<256x128xf32> to vector<16x16x128xf32>
    %c0_7 = arith.constant 0 : index
    %c0_8 = arith.constant 0 : index
    %19 = vector.load %arg4[%c0_7, %c0_8] : memref<16x128xf32, #tpu.memory_space<vmem>>, vector<16x128xf32>
    %20 = vector.shape_cast %19 : vector<16x128xf32> to vector<1x16x128xf32>
    %21 = vector.broadcast %20 : vector<1x16x128xf32> to vector<16x16x128xf32>
    %22 = arith.mulf %18, %21 : vector<16x16x128xf32>
    %cst_9 = arith.constant dense<0xFF800000> : vector<16x128xf32>
    %23 = vector.multi_reduction <maximumf>, %22, %cst_9 [1] : vector<16x16x128xf32> to vector<16x128xf32>
    %24 = arith.truncf %23 : vector<16x128xf32> to vector<16x128xbf16>
    %c0_10 = arith.constant 0 : index
    %c0_11 = arith.constant 0 : index
    %25 = vector.load %arg5[%c0_10, %c0_11] : memref<128x128xbf16, #tpu.memory_space<vmem>>, vector<128x128xbf16>
    %cst_12 = arith.constant dense<0.000000e+00> : vector<16x128xf32>
    %26 = tpu.matmul %24, %25, %cst_12 {dimension_numbers = #tpu.dot_dimension_numbers<[1], [0], [0], [1], [0, 0, 1, 1], [], []>} : vector<16x128xbf16>, vector<128x128xbf16>, vector<16x128xf32> -> vector<16x128xf32>
    %c0_13 = arith.constant 0 : index
    %c0_14 = arith.constant 0 : index
    %27 = vector.load %arg6[%c0_13, %c0_14] : memref<1x128xf32, #tpu.memory_space<vmem>>, vector<1x128xf32>
    %28 = vector.broadcast %27 : vector<1x128xf32> to vector<16x128xf32>
    %29 = arith.addf %26, %28 : vector<16x128xf32>
    %c0_15 = arith.constant 0 : index
    %c0_16 = arith.constant 0 : index
    %30 = vector.load %arg7[%c0_15, %c0_16] : memref<16x128xf32, #tpu.memory_space<vmem>>, vector<16x128xf32>
    tpu.vector_store %arg7[%c0_15, %c0_16], %29 {strides = array<i32>} : memref<16x128xf32, #tpu.memory_space<vmem>>, vector<16x128xf32>,
    return
  }
  func.func @transform_0(%arg0: i32) -> (i32, i32, i32) {
    %c0_i32 = arith.constant 0 : i32
    %c0_i32_0 = arith.constant 0 : i32
    %c0_i32_1 = arith.constant 0 : i32
    return %arg0, %c0_i32, %c0_i32_0 : i32, i32, i32
  }
  func.func @transform_1(%arg0: i32) -> (i32, i32) {
    %c0_i32 = arith.constant 0 : i32
    %c0_i32_0 = arith.constant 0 : i32
    %c0_i32_1 = arith.constant 0 : i32
    return %c0_i32, %c0_i32_0 : i32, i32
  }
  func.func @transform_2(%arg0: i32) -> (i32, i32) {
    %c0_i32 = arith.constant 0 : i32
    %c0_i32_0 = arith.constant 0 : i32
    %c0_i32_1 = arith.constant 0 : i32
    return %c0_i32, %c0_i32_0 : i32, i32
  }
  func.func @transform_3(%arg0: i32) -> (i32, i32) {
    %c0_i32 = arith.constant 0 : i32
    %c0_i32_0 = arith.constant 0 : i32
    %c0_i32_1 = arith.constant 0 : i32
    return %c0_i32, %c0_i32_0 : i32, i32
  }
  func.func @transform_4(%arg0: i32) -> (i32, i32) {
    %c0_i32 = arith.constant 0 : i32
    %c0_i32_0 = arith.constant 0 : i32
    %c0_i32_1 = arith.constant 0 : i32
    return %c0_i32, %c0_i32_0 : i32, i32
  }
  func.func @transform_5(%arg0: i32) -> (i32, i32) {
    %c0_i32 = arith.constant 0 : i32
    %c0_i32_0 = arith.constant 0 : i32
    %c0_i32_1 = arith.constant 0 : i32
    return %c0_i32, %c0_i32_0 : i32, i32
  }
  func.func @transform_6(%arg0: i32) -> (i32, i32) {
    %c0_i32 = arith.constant 0 : i32
    %c0_i32_0 = arith.constant 0 : i32
    return %arg0, %c0_i32 : i32, i32
  }
}

</mosaic_0001>

<llo_original>
// kernel: tpu_custom_call.1
$region0: #{tpu_custom_call.1}
  #allocation0 [shape = 'u32[]', space=smem, size = 0x4, offset = 0x4, fixed_abs, tag = 'smem constant byte address 0x4 - core index']
  #allocation1 [shape = 'u32[144,128]{1,0:T(1,128)}', space=vmem, size = 0x12000, scoped, tag = 'internal scratch']
  %s0 = inlined_call_operand.vmem [shape: bf16[32,23,32], index: 0, kind: input, shape index: {}]
  %s1 = inlined_call_operand.vmem [shape: bf16[256,128], index: 1, kind: input, shape index: {}]
  %s2 = inlined_call_operand.vmem [shape: f32[1,128], index: 2, kind: input, shape index: {}]
  %s3 = inlined_call_operand.vmem [shape: f32[16,128], index: 3, kind: input, shape index: {}]
  %s4 = inlined_call_operand.vmem [shape: bf16[128,128], index: 4, kind: input, shape index: {}]
  %s5 = inlined_call_operand.vmem [shape: f32[1,128], index: 5, kind: input, shape index: {}]
  %s6 = inlined_call_operand.hbm [shape: f32[32,128], index: 6, kind: output, shape index: {}]
  %s7 = sld [smem:[#allocation0]]
  $region57: #{tpu_custom_call.1} parent=0
    _
  %s9 = ssub.s32 1, %s7
  %s10 = scalar_select 0, %s9, %s7
  $region1: #{tpu_custom_call.1} parent=0
    #allocation2 [shape = 'u8[16384]{0}', space=vmem, size = 0x4000, scoped, tag = 'output window, operand 0']
    #allocation3 [shape = 's32[2]{0}', space=sflag, size = 0x8, scoped, tag = 'scoped memory for tpu_custom_call.1']
    %11 = vsyncpa [#allocation3], 0
    %s12 = scalar_lea.sflag [#allocation3], 1
    %13 = vsyncpa %s12, 0
    loop: start=0, step=1, limit=4
    $region2: #{tpu_custom_call.1} parent=1 // loop_pre_header
      _
    $region3: #{tpu_custom_call.1} parent=1 // loop_header
      %s15 = sphi 0, %s19
      %p16 = scmp.ge.s32.totalorder %s15, 4
      %s25 = sphi 0, %s27
      %s28 = sphi 0, %s25
      %s29 = sphi 0, %s28
      %s45 = sphi 0, %s29
      %s49 = sphi 0, %s49
      %s51 = sphi 0, %s49
      %s52 = sphi 0, %s51
      %s66 = sphi 0, %s52
      %s70 = sphi 0, %s70
      %s72 = sphi 0, %s70
      %s73 = sphi 0, %s72
      %s87 = sphi 0, %s73
      %s91 = sphi 0, %s91
      %s93 = sphi 0, %s91
      %s94 = sphi 0, %s93
      %s108 = sphi 0, %s94
      %s112 = sphi 0, %s112
      %s114 = sphi 0, %s112
      %s115 = sphi 0, %s114
      %s129 = sphi 0, %s115
      %s133 = sphi 0, %s133
      %s135 = sphi 0, %s133
      %s136 = sphi 0, %s135
      %s150 = sphi 0, %s136
      %s156 = sphi 0, %s158
      %s159 = sphi 0, %s156
      %s160 = sphi 0, %s159
      %s176 = sphi 0, %s160
    $region4: #{tpu_custom_call.1} parent=1 // loop_header_branch
      %18 = sbr.rel (%p16) target = $region8
    $region5: #{tpu_custom_call.1} parent=1 // loop_body
      %s20 = ssub.s32 %s15, 1
      %s21 = ssub.s32 %s15, 2
      %s22 = sadd.s32 %s15, 1
      %s23 = ssub.s32 %s15, %s22
      %p24 = scmp.eq.s32.totalorder %s23, 0
      %s26 = sadd.s32 %s25, 1
      %s27 = scalar_select %p24, %s25, %s26
      %p30 = pneg %p24
      %p31 = scmp.eq.s32.totalorder %s15, 1
      %p32 = por %p30, %p31
      %p33 = scmp.ne.s32.totalorder %s25, %s28
      %p34 = scmp.eq.s32.totalorder %s15, 0
      %p35 = por %p33, %p34
      %p36 = scmp.ne.s32.totalorder %s25, %s28
      %p37 = scmp.eq.s32.totalorder %s20, 1
      %p38 = por %p36, %p37
      %p39 = scmp.ne.s32.totalorder %s28, %s29
      %p40 = scmp.eq.s32.totalorder %s20, 0
      %p41 = por %p39, %p40
      %p42 = scmp.ne.s32.totalorder %s28, %s29
      %p43 = scmp.eq.s32.totalorder %s21, 1
      %p44 = por %p42, %p43
      %p46 = scmp.ne.s32.totalorder %s29, %s45
      %p47 = scmp.eq.s32.totalorder %s21, 0
      %p48 = por %p46, %p47
      %s50 = sadd.s32 %s49, 1
      %p53 = scmp.eq.s32.totalorder %s15, 1
      %p54 = scmp.ne.s32.totalorder %s49, %s51
      %p55 = scmp.eq.s32.totalorder %s15, 0
      %p56 = por %p54, %p55
      %p57 = scmp.ne.s32.totalorder %s49, %s51
      %p58 = scmp.eq.s32.totalorder %s20, 1
      %p59 = por %p57, %p58
      %p60 = scmp.ne.s32.totalorder %s51, %s52
      %p61 = scmp.eq.s32.totalorder %s20, 0
      %p62 = por %p60, %p61
      %p63 = scmp.ne.s32.totalorder %s51, %s52
      %p64 = scmp.eq.s32.totalorder %s21, 1
      %p65 = por %p63, %p64
      %p67 = scmp.ne.s32.totalorder %s52, %s66
      %p68 = scmp.eq.s32.totalorder %s21, 0
      %p69 = por %p67, %p68
      %s71 = sadd.s32 %s70, 1
      %p74 = scmp.eq.s32.totalorder %s15, 1
      %p75 = scmp.ne.s32.totalorder %s70, %s72
      %p76 = scmp.eq.s32.totalorder %s15, 0
      %p77 = por %p75, %p76
      %p78 = scmp.ne.s32.totalorder %s70, %s72
      %p79 = scmp.eq.s32.totalorder %s20, 1
      %p80 = por %p78, %p79
      %p81 = scmp.ne.s32.totalorder %s72, %s73
      %p82 = scmp.eq.s32.totalorder %s20, 0
      %p83 = por %p81, %p82
      %p84 = scmp.ne.s32.totalorder %s72, %s73
      %p85 = scmp.eq.s32.totalorder %s21, 1
      %p86 = por %p84, %p85
      %p88 = scmp.ne.s32.totalorder %s73, %s87
      %p89 = scmp.eq.s32.totalorder %s21, 0
      %p90 = por %p88, %p89
      %s92 = sadd.s32 %s91, 1
      %p95 = scmp.eq.s32.totalorder %s15, 1
      %p96 = scmp.ne.s32.totalorder %s91, %s93
      %p97 = scmp.eq.s32.totalorder %s15, 0
      %p98 = por %p96, %p97
      %p99 = scmp.ne.s32.totalorder %s91, %s93
      %p100 = scmp.eq.s32.totalorder %s20, 1
      %p101 = por %p99, %p100
      %p102 = scmp.ne.s32.totalorder %s93, %s94
      %p103 = scmp.eq.s32.totalorder %s20, 0
      %p104 = por %p102, %p103
      %p105 = scmp.ne.s32.totalorder %s93, %s94
      %p106 = scmp.eq.s32.totalorder %s21, 1
      %p107 = por %p105, %p106
      %p109 = scmp.ne.s32.totalorder %s94, %s108
      %p110 = scmp.eq.s32.totalorder %s21, 0
      %p111 = por %p109, %p110
      %s113 = sadd.s32 %s112, 1
      %p116 = scmp.eq.s32.totalorder %s15, 1
      %p117 = scmp.ne.s32.totalorder %s112, %s114
      %p118 = scmp.eq.s32.totalorder %s15, 0
      %p119 = por %p117, %p118
      %p120 = scmp.ne.s32.totalorder %s112, %s114
      %p121 = scmp.eq.s32.totalorder %s20, 1
      %p122 = por %p120, %p121
      %p123 = scmp.ne.s32.totalorder %s114, %s115
      %p124 = scmp.eq.s32.totalorder %s20, 0
      %p125 = por %p123, %p124
      %p126 = scmp.ne.s32.totalorder %s114, %s115
      %p127 = scmp.eq.s32.totalorder %s21, 1
      %p128 = por %p126, %p127
      %p130 = scmp.ne.s32.totalorder %s115, %s129
      %p131 = scmp.eq.s32.totalorder %s21, 0
      %p132 = por %p130, %p131
      %s134 = sadd.s32 %s133, 1
      %p137 = scmp.eq.s32.totalorder %s15, 1
      %p138 = scmp.ne.s32.totalorder %s133, %s135
      %p139 = scmp.eq.s32.totalorder %s15, 0
      %p140 = por %p138, %p139
      %p141 = scmp.ne.s32.totalorder %s133, %s135
      %p142 = scmp.eq.s32.totalorder %s20, 1
      %p143 = por %p141, %p142
      %p144 = scmp.ne.s32.totalorder %s135, %s136
      %p145 = scmp.eq.s32.totalorder %s20, 0
      %p146 = por %p144, %p145
      %p147 = scmp.ne.s32.totalorder %s135, %s136
      %p148 = scmp.eq.s32.totalorder %s21, 1
      %p149 = por %p147, %p148
      %p151 = scmp.ne.s32.totalorder %s136, %s150
      %p152 = scmp.eq.s32.totalorder %s21, 0
      %p153 = por %p151, %p152
      %s154 = ssub.s32 %s15, %s22
      %p155 = scmp.eq.s32.totalorder %s154, 0
      %s157 = sadd.s32 %s156, 1
      %s158 = scalar_select %p155, %s156, %s157
      %p161 = pneg %p155
      %p162 = scmp.eq.s32.totalorder %s15, 1
      %p163 = por %p161, %p162
      %p164 = scmp.ne.s32.totalorder %s156, %s159
      %p165 = scmp.eq.s32.totalorder %s15, 0
      %p166 = por %p164, %p165
      %p167 = scmp.ne.s32.totalorder %s156, %s159
      %p168 = scmp.eq.s32.totalorder %s20, 1
      %p169 = por %p167, %p168
      %p170 = scmp.ne.s32.totalorder %s159, %s160
      %p171 = scmp.eq.s32.totalorder %s20, 0
      %p172 = por %p170, %p171
      %p173 = scmp.ne.s32.totalorder %s159, %s160
      %p174 = scmp.eq.s32.totalorder %s21, 1
      %p175 = por %p173, %p174
      %p177 = scmp.ne.s32.totalorder %s160, %s176
      %p178 = scmp.eq.s32.totalorder %s21, 0
      %p179 = por %p177, %p178
      %p180 = scmp.le.s32.totalorder 1, %s15
      %p181 = scmp.lt.s32.totalorder %s15, 3
      %p182 = pnand %p180, %p181
      %p183 = pneg %p182
      // Predicated region
      $region9: #{tpu_custom_call.1} parent=5 // pred_check
        _
      $region10: #{tpu_custom_call.1} parent=5 // pred_check_branch
        %185 = sbr.rel (%p182) target = $region12
      $region11: #{tpu_custom_call.1} parent=5 // pred_region
        %s186 = ssub.s32 %s15, 1
        // Predicated region
        $region13: #{tpu_custom_call.1} parent=11 // pred_check
          %p187 = pneg %p62
        $region14: #{tpu_custom_call.1} parent=11 // pred_check_branch
          %189 = sbr.rel (%p187) target = $region16
        $region15: #{tpu_custom_call.1} parent=11 // pred_region
          _
        $region16: #{tpu_custom_call.1} parent=11 // pred_fallthru
          _
        // Predicated region
        $region17: #{tpu_custom_call.1} parent=11 // pred_check
          %p190 = pneg %p83
        $region18: #{tpu_custom_call.1} parent=11 // pred_check_branch
          %192 = sbr.rel (%p190) target = $region20
        $region19: #{tpu_custom_call.1} parent=11 // pred_region
          _
        $region20: #{tpu_custom_call.1} parent=11 // pred_fallthru
          _
        // Predicated region
        $region21: #{tpu_custom_call.1} parent=11 // pred_check
          %p193 = pneg %p104
        $region22: #{tpu_custom_call.1} parent=11 // pred_check_branch
          %195 = sbr.rel (%p193) target = $region24
        $region23: #{tpu_custom_call.1} parent=11 // pred_region
          _
        $region24: #{tpu_custom_call.1} parent=11 // pred_fallthru
          _
        // Predicated region
        $region25: #{tpu_custom_call.1} parent=11 // pred_check
          %p196 = pneg %p125
        $region26: #{tpu_custom_call.1} parent=11 // pred_check_branch
          %198 = sbr.rel (%p196) target = $region28
        $region27: #{tpu_custom_call.1} parent=11 // pred_region
          _
        $region28: #{tpu_custom_call.1} parent=11 // pred_fallthru
          _
        // Predicated region
        $region29: #{tpu_custom_call.1} parent=11 // pred_check
          %p199 = pneg %p146
        $region30: #{tpu_custom_call.1} parent=11 // pred_check_branch
          %201 = sbr.rel (%p199) target = $region32
        $region31: #{tpu_custom_call.1} parent=11 // pred_region
          _
        $region32: #{tpu_custom_call.1} parent=11 // pred_fallthru
          _
      $region12: #{tpu_custom_call.1} parent=5 // pred_fallthru
        _
      %p202 = scmp.lt.s32.totalorder %s15, 2
      // Predicated region
      $region33: #{tpu_custom_call.1} parent=5 // pred_check
        %p203 = pneg %p202
      $region34: #{tpu_custom_call.1} parent=5 // pred_check_branch
        %205 = sbr.rel (%p203) target = $region36
      $region35: #{tpu_custom_call.1} parent=5 // pred_region
        // Predicated region
        $region37: #{tpu_custom_call.1} parent=35 // pred_check
          %p206 = pneg %p35
        $region38: #{tpu_custom_call.1} parent=35 // pred_check_branch
          %208 = sbr.rel (%p206) target = $region40
        $region39: #{tpu_custom_call.1} parent=35 // pred_region
          %s209 = smul.u32 16, %s15
          %p210 = scmp.lt.s32.totalorder %s209, 31
          %s211 = scalar_select %p210, %s209, 31
          %s212 = smul.addr %s211, 3
          %s213 = smul.addr %s212, 4
          %s214 = scalar_lea.vmem %s0, %s213
          %s215 = smul.u32 16, %s15
        $region40: #{tpu_custom_call.1} parent=35 // pred_fallthru
          _
      $region36: #{tpu_custom_call.1} parent=5 // pred_fallthru
        _
      %p216 = scmp.le.s32.totalorder 1, %s15
      %p217 = scmp.lt.s32.totalorder %s15, 3
      %p218 = pnand %p216, %p217
      %p219 = pneg %p218
      // Predicated region
      $region41: #{tpu_custom_call.1} parent=5 // pred_check
        _
      $region42: #{tpu_custom_call.1} parent=5 // pred_check_branch
        %221 = sbr.rel (%p218) target = $region44
      $region43: #{tpu_custom_call.1} parent=5 // pred_region
        %s222 = ssub.s32 %s15, 1
        %s223 = smul.u32 16, %s20
        %p224 = scmp.lt.s32.totalorder %s223, 31
        %s225 = scalar_select %p224, %s223, 31
        %s226 = smul.addr %s225, 3
        %s227 = smul.addr %s226, 4
        %s228 = scalar_lea.vmem %s0, %s227
        %p229 = pneg %p41
        %p230 = pneg %p38
        %p231 = pneg %p62
        %p232 = pneg %p59
        %p233 = pneg %p83
        %p234 = pneg %p80
        %p235 = pneg %p104
        %p236 = pneg %p101
        %p237 = pneg %p125
        %p238 = pneg %p122
        %p239 = pneg %p146
        %p240 = pneg %p143
        %p241 = pneg %p172
        %p242 = pneg %p169
        %s243 = sand.u32 %s159, 1
        %s244 = scalar_lea.sflag [#allocation3], %s243
        %s245 = sand.u32 %s159, 1
        %s246 = smul.addr %s245, 16
        %s247 = scalar_lea.vmem [#allocation2], %s246
        %s248 = smul.u32 16, %s20
        %p249 = scmp.lt.s32.totalorder %s248, 31
        %s250 = scalar_select %p249, %s248, 31
        %s251 = smul.addr %s250, 3
        %s252 = smul.addr %s251, 4
        %s253 = scalar_lea.vmem %s0, %s252
        %s254 = smul.u32 16, %s20
        %s255 = smul.u32 2, %s20
        %v257 = vld [vmem:[%s253] sm:$0xf]
        %v258 = vld [vmem:[%s253 + $0x4] sm:$0xf]
        %v259 = vld [vmem:[%s253 + $0x8] sm:$0xf]
        %v260 = vld [vmem:[%s253 + $0xc] sm:$0xf]
        %v261 = vld [vmem:[%s253 + $0x10] sm:$0xf]
        %v262 = vld [vmem:[%s253 + $0x14] sm:$0xf]
        %v263 = vld [vmem:[%s253 + $0x18] sm:$0xf]
        %v264 = vld [vmem:[%s253 + $0x1c] sm:$0xf]
        %v265 = vld [vmem:[%s253 + $0x20] sm:$0xf]
        %v266 = vld [vmem:[%s253 + $0x24] sm:$0xf]
        %v267 = vld [vmem:[%s253 + $0x28] sm:$0xf]
        %v268 = vld [vmem:[%s253 + $0x2c] sm:$0xf]
        %v269 = vld [vmem:[%s253 + $0x30] sm:$0xf]
        %v270 = vld [vmem:[%s253 + $0x34] sm:$0xf]
        %v271 = vld [vmem:[%s253 + $0x38] sm:$0xf]
        %v272 = vld [vmem:[%s253 + $0x3c] sm:$0xf]
        %v273 = vld [vmem:[%s253 + $0x40] sm:$0xf]
        %v274 = vld [vmem:[%s253 + $0x44] sm:$0xf]
        %v275 = vld [vmem:[%s253 + $0x48] sm:$0xf]
        %v276 = vld [vmem:[%s253 + $0x4c] sm:$0xf]
        %v277 = vld [vmem:[%s253 + $0x50] sm:$0xf]
        %v278 = vld [vmem:[%s253 + $0x54] sm:$0xf]
        %v279 = vld [vmem:[%s253 + $0x58] sm:$0xf]
        %v280 = vld [vmem:[%s253 + $0x5c] sm:$0xf]
        %v281 = vld [vmem:[%s253 + $0x60] sm:$0xf]
        %v282 = vld [vmem:[%s253 + $0x64] sm:$0xf]
        %v283 = vld [vmem:[%s253 + $0x68] sm:$0xf]
        %v284 = vld [vmem:[%s253 + $0x6c] sm:$0xf]
        %v285 = vld [vmem:[%s253 + $0x70] sm:$0xf]
        %v286 = vld [vmem:[%s253 + $0x74] sm:$0xf]
        %v287 = vld [vmem:[%s253 + $0x78] sm:$0xf]
        %v288 = vld [vmem:[%s253 + $0x7c] sm:$0xf]
        %v289 = vld [vmem:[%s253 + $0x80] sm:$0xf]
        %v290 = vld [vmem:[%s253 + $0x84] sm:$0xf]
        %v291 = vld [vmem:[%s253 + $0x88] sm:$0xf]
        %v292 = vld [vmem:[%s253 + $0x8c] sm:$0xf]
        %v293 = vld [vmem:[%s253 + $0x90] sm:$0xf]
        %v294 = vld [vmem:[%s253 + $0x94] sm:$0xf]
        %v295 = vld [vmem:[%s253 + $0x98] sm:$0xf]
        %v296 = vld [vmem:[%s253 + $0x9c] sm:$0xf]
        %v297 = vld [vmem:[%s253 + $0xa0] sm:$0xf]
        %v298 = vld [vmem:[%s253 + $0xa4] sm:$0xf]
        %v299 = vld [vmem:[%s253 + $0xa8] sm:$0xf]
        %v300 = vld [vmem:[%s253 + $0xac] sm:$0xf]
        %v301 = vld [vmem:[%s253 + $0xb0] sm:$0xf]
        %v302 = vld [vmem:[%s253 + $0xb4] sm:$0xf]
        %v303 = vld [vmem:[%s253 + $0xb8] sm:$0xf]
        %v304 = vld [vmem:[%s253 + $0xbc] sm:$0xf]
        %v337 = vunpack.c.l.b16 %v257
        %v338 = vunpack.c.l.b16 %v258
        %v339 = vunpack.c.l.b16 %v260
        %v340 = vunpack.c.l.b16 %v261
        %v341 = vunpack.c.l.b16 %v263
        %v342 = vunpack.c.l.b16 %v264
        %v343 = vunpack.c.l.b16 %v266
        %v344 = vunpack.c.l.b16 %v267
        %v345 = vunpack.c.l.b16 %v269
        %v346 = vunpack.c.l.b16 %v270
        %v347 = vunpack.c.l.b16 %v272
        %v348 = vunpack.c.l.b16 %v273
        %v349 = vunpack.c.l.b16 %v275
        %v350 = vunpack.c.l.b16 %v276
        %v351 = vunpack.c.l.b16 %v278
        %v352 = vunpack.c.l.b16 %v279
        %v353 = vunpack.c.l.b16 %v281
        %v354 = vunpack.c.l.b16 %v282
        %v355 = vunpack.c.l.b16 %v284
        %v356 = vunpack.c.l.b16 %v285
        %v357 = vunpack.c.l.b16 %v287
        %v358 = vunpack.c.l.b16 %v288
        %v359 = vunpack.c.l.b16 %v290
        %v360 = vunpack.c.l.b16 %v291
        %v361 = vunpack.c.l.b16 %v293
        %v362 = vunpack.c.l.b16 %v294
        %v363 = vunpack.c.l.b16 %v296
        %v364 = vunpack.c.l.b16 %v297
        %v365 = vunpack.c.l.b16 %v299
        %v366 = vunpack.c.l.b16 %v300
        %v367 = vunpack.c.l.b16 %v302
        %v368 = vunpack.c.l.b16 %v303
        %v369 = vpack.c.b16 %v338, %v337
        %v370 = vpack.c.b16 %v340, %v339
        %v371 = vpack.c.b16 %v342, %v341
        %v372 = vpack.c.b16 %v344, %v343
        %v373 = vpack.c.b16 %v346, %v345
        %v374 = vpack.c.b16 %v348, %v347
        %v375 = vpack.c.b16 %v350, %v349
        %v376 = vpack.c.b16 %v352, %v351
        %v377 = vpack.c.b16 %v354, %v353
        %v378 = vpack.c.b16 %v356, %v355
        %v379 = vpack.c.b16 %v358, %v357
        %v380 = vpack.c.b16 %v360, %v359
        %v381 = vpack.c.b16 %v362, %v361
        %v382 = vpack.c.b16 %v364, %v363
        %v383 = vpack.c.b16 %v366, %v365
        %v384 = vpack.c.b16 %v368, %v367
        %v401 = vunpack.c.l.b16 %v259
        %v402 = vunpack.c.l.b16 %v262
        %v403 = vunpack.c.l.b16 %v265
        %v404 = vunpack.c.l.b16 %v268
        %v405 = vunpack.c.l.b16 %v271
        %v406 = vunpack.c.l.b16 %v274
        %v407 = vunpack.c.l.b16 %v277
        %v408 = vunpack.c.l.b16 %v280
        %v409 = vunpack.c.l.b16 %v283
        %v410 = vunpack.c.l.b16 %v286
        %v411 = vunpack.c.l.b16 %v289
        %v412 = vunpack.c.l.b16 %v292
        %v413 = vunpack.c.l.b16 %v295
        %v414 = vunpack.c.l.b16 %v298
        %v415 = vunpack.c.l.b16 %v301
        %v416 = vunpack.c.l.b16 %v304
        %v417 = vpack.c.b16 %v401, %v401
        %v418 = vpack.c.b16 %v402, %v402
        %v419 = vpack.c.b16 %v403, %v403
        %v420 = vpack.c.b16 %v404, %v404
        %v421 = vpack.c.b16 %v405, %v405
        %v422 = vpack.c.b16 %v406, %v406
        %v423 = vpack.c.b16 %v407, %v407
        %v424 = vpack.c.b16 %v408, %v408
        %v425 = vpack.c.b16 %v409, %v409
        %v426 = vpack.c.b16 %v410, %v410
        %v427 = vpack.c.b16 %v411, %v411
        %v428 = vpack.c.b16 %v412, %v412
        %v429 = vpack.c.b16 %v413, %v413
        %v430 = vpack.c.b16 %v414, %v414
        %v431 = vpack.c.b16 %v415, %v415
        %v432 = vpack.c.b16 %v416, %v416
        %vm433 = vsmask.f32 7424
        %v435 = vshrl.u32 %v369, 16
        %v437 = vshll.u32 %v369, 16
        %v439 = vrot.slane %v437, 1
        %v440 = vor.u32 %v435, %v439
        %v442 = vshll.u32 %v417, 16
        %v444 = vrot.slane %v442, 1
        %v445 = vsel %vm433, %v440, %v444
        %v447 = vshrl.u32 %v370, 16
        %v449 = vshll.u32 %v370, 16
        %v451 = vrot.slane %v449, 1
        %v452 = vor.u32 %v447, %v451
        %v454 = vshll.u32 %v418, 16
        %v456 = vrot.slane %v454, 1
        %v457 = vsel %vm433, %v452, %v456
        %v459 = vshrl.u32 %v371, 16
        %v461 = vshll.u32 %v371, 16
        %v463 = vrot.slane %v461, 1
        %v464 = vor.u32 %v459, %v463
        %v466 = vshll.u32 %v419, 16
        %v468 = vrot.slane %v466, 1
        %v469 = vsel %vm433, %v464, %v468
        %v471 = vshrl.u32 %v372, 16
        %v473 = vshll.u32 %v372, 16
        %v475 = vrot.slane %v473, 1
        %v476 = vor.u32 %v471, %v475
        %v478 = vshll.u32 %v420, 16
        %v480 = vrot.slane %v478, 1
        %v481 = vsel %vm433, %v476, %v480
        %v483 = vshrl.u32 %v373, 16
        %v485 = vshll.u32 %v373, 16
        %v487 = vrot.slane %v485, 1
        %v488 = vor.u32 %v483, %v487
        %v490 = vshll.u32 %v421, 16
        %v492 = vrot.slane %v490, 1
        %v493 = vsel %vm433, %v488, %v492
        %v495 = vshrl.u32 %v374, 16
        %v497 = vshll.u32 %v374, 16
        %v499 = vrot.slane %v497, 1
        %v500 = vor.u32 %v495, %v499
        %v502 = vshll.u32 %v422, 16
        %v504 = vrot.slane %v502, 1
        %v505 = vsel %vm433, %v500, %v504
        %v507 = vshrl.u32 %v375, 16
        %v509 = vshll.u32 %v375, 16
        %v511 = vrot.slane %v509, 1
        %v512 = vor.u32 %v507, %v511
        %v514 = vshll.u32 %v423, 16
        %v516 = vrot.slane %v514, 1
        %v517 = vsel %vm433, %v512, %v516
        %v519 = vshrl.u32 %v376, 16
        %v521 = vshll.u32 %v376, 16
        %v523 = vrot.slane %v521, 1
        %v524 = vor.u32 %v519, %v523
        %v526 = vshll.u32 %v424, 16
        %v528 = vrot.slane %v526, 1
        %v529 = vsel %vm433, %v524, %v528
        %v531 = vshrl.u32 %v377, 16
        %v533 = vshll.u32 %v377, 16
        %v535 = vrot.slane %v533, 1
        %v536 = vor.u32 %v531, %v535
        %v538 = vshll.u32 %v425, 16
        %v540 = vrot.slane %v538, 1
        %v541 = vsel %vm433, %v536, %v540
        %v543 = vshrl.u32 %v378, 16
        %v545 = vshll.u32 %v378, 16
        %v547 = vrot.slane %v545, 1
        %v548 = vor.u32 %v543, %v547
        %v550 = vshll.u32 %v426, 16
        %v552 = vrot.slane %v550, 1
        %v553 = vsel %vm433, %v548, %v552
        %v555 = vshrl.u32 %v379, 16
        %v557 = vshll.u32 %v379, 16
        %v559 = vrot.slane %v557, 1
        %v560 = vor.u32 %v555, %v559
        %v562 = vshll.u32 %v427, 16
        %v564 = vrot.slane %v562, 1
        %v565 = vsel %vm433, %v560, %v564
        %v567 = vshrl.u32 %v380, 16
        %v569 = vshll.u32 %v380, 16
        %v571 = vrot.slane %v569, 1
        %v572 = vor.u32 %v567, %v571
        %v574 = vshll.u32 %v428, 16
        %v576 = vrot.slane %v574, 1
        %v577 = vsel %vm433, %v572, %v576
        %v579 = vshrl.u32 %v381, 16
        %v581 = vshll.u32 %v381, 16
        %v583 = vrot.slane %v581, 1
        %v584 = vor.u32 %v579, %v583
        %v586 = vshll.u32 %v429, 16
        %v588 = vrot.slane %v586, 1
        %v589 = vsel %vm433, %v584, %v588
        %v591 = vshrl.u32 %v382, 16
        %v593 = vshll.u32 %v382, 16
        %v595 = vrot.slane %v593, 1
        %v596 = vor.u32 %v591, %v595
        %v598 = vshll.u32 %v430, 16
        %v600 = vrot.slane %v598, 1
        %v601 = vsel %vm433, %v596, %v600
        %v603 = vshrl.u32 %v383, 16
        %v605 = vshll.u32 %v383, 16
        %v607 = vrot.slane %v605, 1
        %v608 = vor.u32 %v603, %v607
        %v610 = vshll.u32 %v431, 16
        %v612 = vrot.slane %v610, 1
        %v613 = vsel %vm433, %v608, %v612
        %v615 = vshrl.u32 %v384, 16
        %v617 = vshll.u32 %v384, 16
        %v619 = vrot.slane %v617, 1
        %v620 = vor.u32 %v615, %v619
        %v622 = vshll.u32 %v432, 16
        %v624 = vrot.slane %v622, 1
        %v625 = vsel %vm433, %v620, %v624
        %626 = vrot.lane.b32.xlu0 %v445, 32
        %v627 = vpop.permute.xlu0 %626
        %628 = vrot.lane.b32.xlu0 %v457, 32
        %v629 = vpop.permute.xlu0 %628
        %630 = vrot.lane.b32.xlu0 %v469, 32
        %v631 = vpop.permute.xlu0 %630
        %632 = vrot.lane.b32.xlu0 %v481, 32
        %v633 = vpop.permute.xlu0 %632
        %634 = vrot.lane.b32.xlu0 %v493, 32
        %v635 = vpop.permute.xlu0 %634
        %636 = vrot.lane.b32.xlu0 %v505, 32
        %v637 = vpop.permute.xlu0 %636
        %638 = vrot.lane.b32.xlu0 %v517, 32
        %v639 = vpop.permute.xlu0 %638
        %640 = vrot.lane.b32.xlu0 %v529, 32
        %v641 = vpop.permute.xlu0 %640
        %642 = vrot.lane.b32.xlu0 %v541, 32
        %v643 = vpop.permute.xlu0 %642
        %644 = vrot.lane.b32.xlu0 %v553, 32
        %v645 = vpop.permute.xlu0 %644
        %646 = vrot.lane.b32.xlu0 %v565, 32
        %v647 = vpop.permute.xlu0 %646
        %648 = vrot.lane.b32.xlu0 %v577, 32
        %v649 = vpop.permute.xlu0 %648
        %650 = vrot.lane.b32.xlu0 %v589, 32
        %v651 = vpop.permute.xlu0 %650
        %652 = vrot.lane.b32.xlu0 %v601, 32
        %v653 = vpop.permute.xlu0 %652
        %654 = vrot.lane.b32.xlu0 %v613, 32
        %v655 = vpop.permute.xlu0 %654
        %656 = vrot.lane.b32.xlu0 %v625, 32
        %v657 = vpop.permute.xlu0 %656
        %vm658 = vcmask 1046528
        %v659 = vrot.slane %v369, 1
        %v660 = vrot.slane %v417, 1
        %v661 = vsel %vm658, %v659, %v660
        %v662 = vrot.slane %v370, 1
        %v663 = vrot.slane %v418, 1
        %v664 = vsel %vm658, %v662, %v663
        %v665 = vrot.slane %v371, 1
        %v666 = vrot.slane %v419, 1
        %v667 = vsel %vm658, %v665, %v666
        %v668 = vrot.slane %v372, 1
        %v669 = vrot.slane %v420, 1
        %v670 = vsel %vm658, %v668, %v669
        %v671 = vrot.slane %v373, 1
        %v672 = vrot.slane %v421, 1
        %v673 = vsel %vm658, %v671, %v672
        %v674 = vrot.slane %v374, 1
        %v675 = vrot.slane %v422, 1
        %v676 = vsel %vm658, %v674, %v675
        %v677 = vrot.slane %v375, 1
        %v678 = vrot.slane %v423, 1
        %v679 = vsel %vm658, %v677, %v678
        %v680 = vrot.slane %v376, 1
        %v681 = vrot.slane %v424, 1
        %v682 = vsel %vm658, %v680, %v681
        %v683 = vrot.slane %v377, 1
        %v684 = vrot.slane %v425, 1
        %v685 = vsel %vm658, %v683, %v684
        %v686 = vrot.slane %v378, 1
        %v687 = vrot.slane %v426, 1
        %v688 = vsel %vm658, %v686, %v687
        %v689 = vrot.slane %v379, 1
        %v690 = vrot.slane %v427, 1
        %v691 = vsel %vm658, %v689, %v690
        %v692 = vrot.slane %v380, 1
        %v693 = vrot.slane %v428, 1
        %v694 = vsel %vm658, %v692, %v693
        %v695 = vrot.slane %v381, 1
        %v696 = vrot.slane %v429, 1
        %v697 = vsel %vm658, %v695, %v696
        %v698 = vrot.slane %v382, 1
        %v699 = vrot.slane %v430, 1
        %v700 = vsel %vm658, %v698, %v699
        %v701 = vrot.slane %v383, 1
        %v702 = vrot.slane %v431, 1
        %v703 = vsel %vm658, %v701, %v702
        %v704 = vrot.slane %v384, 1
        %v705 = vrot.slane %v432, 1
        %v706 = vsel %vm658, %v704, %v705
        %707 = vrot.lane.b32.xlu0 %v661, 64
        %v708 = vpop.permute.xlu0 %707
        %709 = vrot.lane.b32.xlu0 %v664, 64
        %v710 = vpop.permute.xlu0 %709
        %711 = vrot.lane.b32.xlu0 %v667, 64
        %v712 = vpop.permute.xlu0 %711
        %713 = vrot.lane.b32.xlu0 %v670, 64
        %v714 = vpop.permute.xlu0 %713
        %715 = vrot.lane.b32.xlu0 %v673, 64
        %v716 = vpop.permute.xlu0 %715
        %717 = vrot.lane.b32.xlu0 %v676, 64
        %v718 = vpop.permute.xlu0 %717
        %719 = vrot.lane.b32.xlu0 %v679, 64
        %v720 = vpop.permute.xlu0 %719
        %721 = vrot.lane.b32.xlu0 %v682, 64
        %v722 = vpop.permute.xlu0 %721
        %723 = vrot.lane.b32.xlu0 %v685, 64
        %v724 = vpop.permute.xlu0 %723
        %725 = vrot.lane.b32.xlu0 %v688, 64
        %v726 = vpop.permute.xlu0 %725
        %727 = vrot.lane.b32.xlu0 %v691, 64
        %v728 = vpop.permute.xlu0 %727
        %729 = vrot.lane.b32.xlu0 %v694, 64
        %v730 = vpop.permute.xlu0 %729
        %731 = vrot.lane.b32.xlu0 %v697, 64
        %v732 = vpop.permute.xlu0 %731
        %733 = vrot.lane.b32.xlu0 %v700, 64
        %v734 = vpop.permute.xlu0 %733
        %735 = vrot.lane.b32.xlu0 %v703, 64
        %v736 = vpop.permute.xlu0 %735
        %737 = vrot.lane.b32.xlu0 %v706, 64
        %v738 = vpop.permute.xlu0 %737
        %vm739 = vsmask.f32 6400
        %v740 = vrot.slane %v435, 1
        %v741 = vrot.slane %v437, 2
        %v742 = vor.u32 %v740, %v741
        %v743 = vshrl.u32 %v417, 16
        %v745 = vrot.slane %v743, 1
        %v746 = vrot.slane %v442, 2
        %v747 = vor.u32 %v745, %v746
        %v748 = vsel %vm739, %v742, %v747
        %v749 = vrot.slane %v447, 1
        %v750 = vrot.slane %v449, 2
        %v751 = vor.u32 %v749, %v750
        %v752 = vshrl.u32 %v418, 16
        %v754 = vrot.slane %v752, 1
        %v755 = vrot.slane %v454, 2
        %v756 = vor.u32 %v754, %v755
        %v757 = vsel %vm739, %v751, %v756
        %v758 = vrot.slane %v459, 1
        %v759 = vrot.slane %v461, 2
        %v760 = vor.u32 %v758, %v759
        %v761 = vshrl.u32 %v419, 16
        %v763 = vrot.slane %v761, 1
        %v764 = vrot.slane %v466, 2
        %v765 = vor.u32 %v763, %v764
        %v766 = vsel %vm739, %v760, %v765
        %v767 = vrot.slane %v471, 1
        %v768 = vrot.slane %v473, 2
        %v769 = vor.u32 %v767, %v768
        %v770 = vshrl.u32 %v420, 16
        %v772 = vrot.slane %v770, 1
        %v773 = vrot.slane %v478, 2
        %v774 = vor.u32 %v772, %v773
        %v775 = vsel %vm739, %v769, %v774
        %v776 = vrot.slane %v483, 1
        %v777 = vrot.slane %v485, 2
        %v778 = vor.u32 %v776, %v777
        %v779 = vshrl.u32 %v421, 16
        %v781 = vrot.slane %v779, 1
        %v782 = vrot.slane %v490, 2
        %v783 = vor.u32 %v781, %v782
        %v784 = vsel %vm739, %v778, %v783
        %v785 = vrot.slane %v495, 1
        %v786 = vrot.slane %v497, 2
        %v787 = vor.u32 %v785, %v786
        %v788 = vshrl.u32 %v422, 16
        %v790 = vrot.slane %v788, 1
        %v791 = vrot.slane %v502, 2
        %v792 = vor.u32 %v790, %v791
        %v793 = vsel %vm739, %v787, %v792
        %v794 = vrot.slane %v507, 1
        %v795 = vrot.slane %v509, 2
        %v796 = vor.u32 %v794, %v795
        %v797 = vshrl.u32 %v423, 16
        %v799 = vrot.slane %v797, 1
        %v800 = vrot.slane %v514, 2
        %v801 = vor.u32 %v799, %v800
        %v802 = vsel %vm739, %v796, %v801
        %v803 = vrot.slane %v519, 1
        %v804 = vrot.slane %v521, 2
        %v805 = vor.u32 %v803, %v804
        %v806 = vshrl.u32 %v424, 16
        %v808 = vrot.slane %v806, 1
        %v809 = vrot.slane %v526, 2
        %v810 = vor.u32 %v808, %v809
        %v811 = vsel %vm739, %v805, %v810
        %v812 = vrot.slane %v531, 1
        %v813 = vrot.slane %v533, 2
        %v814 = vor.u32 %v812, %v813
        %v815 = vshrl.u32 %v425, 16
        %v817 = vrot.slane %v815, 1
        %v818 = vrot.slane %v538, 2
        %v819 = vor.u32 %v817, %v818
        %v820 = vsel %vm739, %v814, %v819
        %v821 = vrot.slane %v543, 1
        %v822 = vrot.slane %v545, 2
        %v823 = vor.u32 %v821, %v822
        %v824 = vshrl.u32 %v426, 16
        %v826 = vrot.slane %v824, 1
        %v827 = vrot.slane %v550, 2
        %v828 = vor.u32 %v826, %v827
        %v829 = vsel %vm739, %v823, %v828
        %v830 = vrot.slane %v555, 1
        %v831 = vrot.slane %v557, 2
        %v832 = vor.u32 %v830, %v831
        %v833 = vshrl.u32 %v427, 16
        %v835 = vrot.slane %v833, 1
        %v836 = vrot.slane %v562, 2
        %v837 = vor.u32 %v835, %v836
        %v838 = vsel %vm739, %v832, %v837
        %v839 = vrot.slane %v567, 1
        %v840 = vrot.slane %v569, 2
        %v841 = vor.u32 %v839, %v840
        %v842 = vshrl.u32 %v428, 16
        %v844 = vrot.slane %v842, 1
        %v845 = vrot.slane %v574, 2
        %v846 = vor.u32 %v844, %v845
        %v847 = vsel %vm739, %v841, %v846
        %v848 = vrot.slane %v579, 1
        %v849 = vrot.slane %v581, 2
        %v850 = vor.u32 %v848, %v849
        %v851 = vshrl.u32 %v429, 16
        %v853 = vrot.slane %v851, 1
        %v854 = vrot.slane %v586, 2
        %v855 = vor.u32 %v853, %v854
        %v856 = vsel %vm739, %v850, %v855
        %v857 = vrot.slane %v591, 1
        %v858 = vrot.slane %v593, 2
        %v859 = vor.u32 %v857, %v858
        %v860 = vshrl.u32 %v430, 16
        %v862 = vrot.slane %v860, 1
        %v863 = vrot.slane %v598, 2
        %v864 = vor.u32 %v862, %v863
        %v865 = vsel %vm739, %v859, %v864
        %v866 = vrot.slane %v603, 1
        %v867 = vrot.slane %v605, 2
        %v868 = vor.u32 %v866, %v867
        %v869 = vshrl.u32 %v431, 16
        %v871 = vrot.slane %v869, 1
        %v872 = vrot.slane %v610, 2
        %v873 = vor.u32 %v871, %v872
        %v874 = vsel %vm739, %v868, %v873
        %v875 = vrot.slane %v615, 1
        %v876 = vrot.slane %v617, 2
        %v877 = vor.u32 %v875, %v876
        %v878 = vshrl.u32 %v432, 16
        %v880 = vrot.slane %v878, 1
        %v881 = vrot.slane %v622, 2
        %v882 = vor.u32 %v880, %v881
        %v883 = vsel %vm739, %v877, %v882
        %884 = vrot.lane.b32.xlu0 %v748, 96
        %v885 = vpop.permute.xlu0 %884
        %886 = vrot.lane.b32.xlu0 %v757, 96
        %v887 = vpop.permute.xlu0 %886
        %888 = vrot.lane.b32.xlu0 %v766, 96
        %v889 = vpop.permute.xlu0 %888
        %890 = vrot.lane.b32.xlu0 %v775, 96
        %v891 = vpop.permute.xlu0 %890
        %892 = vrot.lane.b32.xlu0 %v784, 96
        %v893 = vpop.permute.xlu0 %892
        %894 = vrot.lane.b32.xlu0 %v793, 96
        %v895 = vpop.permute.xlu0 %894
        %896 = vrot.lane.b32.xlu0 %v802, 96
        %v897 = vpop.permute.xlu0 %896
        %898 = vrot.lane.b32.xlu0 %v811, 96
        %v899 = vpop.permute.xlu0 %898
        %900 = vrot.lane.b32.xlu0 %v820, 96
        %v901 = vpop.permute.xlu0 %900
        %902 = vrot.lane.b32.xlu0 %v829, 96
        %v903 = vpop.permute.xlu0 %902
        %904 = vrot.lane.b32.xlu0 %v838, 96
        %v905 = vpop.permute.xlu0 %904
        %906 = vrot.lane.b32.xlu0 %v847, 96
        %v907 = vpop.permute.xlu0 %906
        %908 = vrot.lane.b32.xlu0 %v856, 96
        %v909 = vpop.permute.xlu0 %908
        %910 = vrot.lane.b32.xlu0 %v865, 96
        %v911 = vpop.permute.xlu0 %910
        %912 = vrot.lane.b32.xlu0 %v874, 96
        %v913 = vpop.permute.xlu0 %912
        %914 = vrot.lane.b32.xlu0 %v883, 96
        %v915 = vpop.permute.xlu0 %914
        %vm916 = vcmask 1045504
        %v917 = vrot.slane %v369, 2
        %v918 = vrot.slane %v417, 2
        %v919 = vsel %vm916, %v917, %v918
        %v920 = vrot.slane %v370, 2
        %v921 = vrot.slane %v418, 2
        %v922 = vsel %vm916, %v920, %v921
        %v923 = vrot.slane %v371, 2
        %v924 = vrot.slane %v419, 2
        %v925 = vsel %vm916, %v923, %v924
        %v926 = vrot.slane %v372, 2
        %v927 = vrot.slane %v420, 2
        %v928 = vsel %vm916, %v926, %v927
        %v929 = vrot.slane %v373, 2
        %v930 = vrot.slane %v421, 2
        %v931 = vsel %vm916, %v929, %v930
        %v932 = vrot.slane %v374, 2
        %v933 = vrot.slane %v422, 2
        %v934 = vsel %vm916, %v932, %v933
        %v935 = vrot.slane %v375, 2
        %v936 = vrot.slane %v423, 2
        %v937 = vsel %vm916, %v935, %v936
        %v938 = vrot.slane %v376, 2
        %v939 = vrot.slane %v424, 2
        %v940 = vsel %vm916, %v938, %v939
        %v941 = vrot.slane %v377, 2
        %v942 = vrot.slane %v425, 2
        %v943 = vsel %vm916, %v941, %v942
        %v944 = vrot.slane %v378, 2
        %v945 = vrot.slane %v426, 2
        %v946 = vsel %vm916, %v944, %v945
        %v947 = vrot.slane %v379, 2
        %v948 = vrot.slane %v427, 2
        %v949 = vsel %vm916, %v947, %v948
        %v950 = vrot.slane %v380, 2
        %v951 = vrot.slane %v428, 2
        %v952 = vsel %vm916, %v950, %v951
        %v953 = vrot.slane %v381, 2
        %v954 = vrot.slane %v429, 2
        %v955 = vsel %vm916, %v953, %v954
        %v956 = vrot.slane %v382, 2
        %v957 = vrot.slane %v430, 2
        %v958 = vsel %vm916, %v956, %v957
        %v959 = vrot.slane %v383, 2
        %v960 = vrot.slane %v431, 2
        %v961 = vsel %vm916, %v959, %v960
        %v962 = vrot.slane %v384, 2
        %v963 = vrot.slane %v432, 2
        %v964 = vsel %vm916, %v962, %v963
        %vm965 = vsmask.f32 5376
        %v966 = vrot.slane %v435, 2
        %v967 = vrot.slane %v437, 3
        %v968 = vor.u32 %v966, %v967
        %v969 = vrot.slane %v743, 2
        %v970 = vrot.slane %v442, 3
        %v971 = vor.u32 %v969, %v970
        %v972 = vsel %vm965, %v968, %v971
        %v973 = vrot.slane %v447, 2
        %v974 = vrot.slane %v449, 3
        %v975 = vor.u32 %v973, %v974
        %v976 = vrot.slane %v752, 2
        %v977 = vrot.slane %v454, 3
        %v978 = vor.u32 %v976, %v977
        %v979 = vsel %vm965, %v975, %v978
        %v980 = vrot.slane %v459, 2
        %v981 = vrot.slane %v461, 3
        %v982 = vor.u32 %v980, %v981
        %v983 = vrot.slane %v761, 2
        %v984 = vrot.slane %v466, 3
        %v985 = vor.u32 %v983, %v984
        %v986 = vsel %vm965, %v982, %v985
        %v987 = vrot.slane %v471, 2
        %v988 = vrot.slane %v473, 3
        %v989 = vor.u32 %v987, %v988
        %v990 = vrot.slane %v770, 2
        %v991 = vrot.slane %v478, 3
        %v992 = vor.u32 %v990, %v991
        %v993 = vsel %vm965, %v989, %v992
        %v994 = vrot.slane %v483, 2
        %v995 = vrot.slane %v485, 3
        %v996 = vor.u32 %v994, %v995
        %v997 = vrot.slane %v779, 2
        %v998 = vrot.slane %v490, 3
        %v999 = vor.u32 %v997, %v998
        %v1000 = vsel %vm965, %v996, %v999
        %v1001 = vrot.slane %v495, 2
        %v1002 = vrot.slane %v497, 3
        %v1003 = vor.u32 %v1001, %v1002
        %v1004 = vrot.slane %v788, 2
        %v1005 = vrot.slane %v502, 3
        %v1006 = vor.u32 %v1004, %v1005
        %v1007 = vsel %vm965, %v1003, %v1006
        %v1008 = vrot.slane %v507, 2
        %v1009 = vrot.slane %v509, 3
        %v1010 = vor.u32 %v1008, %v1009
        %v1011 = vrot.slane %v797, 2
        %v1012 = vrot.slane %v514, 3
        %v1013 = vor.u32 %v1011, %v1012
        %v1014 = vsel %vm965, %v1010, %v1013
        %v1015 = vrot.slane %v519, 2
        %v1016 = vrot.slane %v521, 3
        %v1017 = vor.u32 %v1015, %v1016
        %v1018 = vrot.slane %v806, 2
        %v1019 = vrot.slane %v526, 3
        %v1020 = vor.u32 %v1018, %v1019
        %v1021 = vsel %vm965, %v1017, %v1020
        %v1022 = vrot.slane %v531, 2
        %v1023 = vrot.slane %v533, 3
        %v1024 = vor.u32 %v1022, %v1023
        %v1025 = vrot.slane %v815, 2
        %v1026 = vrot.slane %v538, 3
        %v1027 = vor.u32 %v1025, %v1026
        %v1028 = vsel %vm965, %v1024, %v1027
        %v1029 = vrot.slane %v543, 2
        %v1030 = vrot.slane %v545, 3
        %v1031 = vor.u32 %v1029, %v1030
        %v1032 = vrot.slane %v824, 2
        %v1033 = vrot.slane %v550, 3
        %v1034 = vor.u32 %v1032, %v1033
        %v1035 = vsel %vm965, %v1031, %v1034
        %v1036 = vrot.slane %v555, 2
        %v1037 = vrot.slane %v557, 3
        %v1038 = vor.u32 %v1036, %v1037
        %v1039 = vrot.slane %v833, 2
        %v1040 = vrot.slane %v562, 3
        %v1041 = vor.u32 %v1039, %v1040
        %v1042 = vsel %vm965, %v1038, %v1041
        %v1043 = vrot.slane %v567, 2
        %v1044 = vrot.slane %v569, 3
        %v1045 = vor.u32 %v1043, %v1044
        %v1046 = vrot.slane %v842, 2
        %v1047 = vrot.slane %v574, 3
        %v1048 = vor.u32 %v1046, %v1047
        %v1049 = vsel %vm965, %v1045, %v1048
        %v1050 = vrot.slane %v579, 2
        %v1051 = vrot.slane %v581, 3
        %v1052 = vor.u32 %v1050, %v1051
        %v1053 = vrot.slane %v851, 2
        %v1054 = vrot.slane %v586, 3
        %v1055 = vor.u32 %v1053, %v1054
        %v1056 = vsel %vm965, %v1052, %v1055
        %v1057 = vrot.slane %v591, 2
        %v1058 = vrot.slane %v593, 3
        %v1059 = vor.u32 %v1057, %v1058
        %v1060 = vrot.slane %v860, 2
        %v1061 = vrot.slane %v598, 3
        %v1062 = vor.u32 %v1060, %v1061
        %v1063 = vsel %vm965, %v1059, %v1062
        %v1064 = vrot.slane %v603, 2
        %v1065 = vrot.slane %v605, 3
        %v1066 = vor.u32 %v1064, %v1065
        %v1067 = vrot.slane %v869, 2
        %v1068 = vrot.slane %v610, 3
        %v1069 = vor.u32 %v1067, %v1068
        %v1070 = vsel %vm965, %v1066, %v1069
        %v1071 = vrot.slane %v615, 2
        %v1072 = vrot.slane %v617, 3
        %v1073 = vor.u32 %v1071, %v1072
        %v1074 = vrot.slane %v878, 2
        %v1075 = vrot.slane %v622, 3
        %v1076 = vor.u32 %v1074, %v1075
        %v1077 = vsel %vm965, %v1073, %v1076
        %1078 = vrot.lane.b32.xlu0 %v972, 32
        %v1079 = vpop.permute.xlu0 %1078
        %1080 = vrot.lane.b32.xlu0 %v979, 32
        %v1081 = vpop.permute.xlu0 %1080
        %1082 = vrot.lane.b32.xlu0 %v986, 32
        %v1083 = vpop.permute.xlu0 %1082
        %1084 = vrot.lane.b32.xlu0 %v993, 32
        %v1085 = vpop.permute.xlu0 %1084
        %1086 = vrot.lane.b32.xlu0 %v1000, 32
        %v1087 = vpop.permute.xlu0 %1086
        %1088 = vrot.lane.b32.xlu0 %v1007, 32
        %v1089 = vpop.permute.xlu0 %1088
        %1090 = vrot.lane.b32.xlu0 %v1014, 32
        %v1091 = vpop.permute.xlu0 %1090
        %1092 = vrot.lane.b32.xlu0 %v1021, 32
        %v1093 = vpop.permute.xlu0 %1092
        %1094 = vrot.lane.b32.xlu0 %v1028, 32
        %v1095 = vpop.permute.xlu0 %1094
        %1096 = vrot.lane.b32.xlu0 %v1035, 32
        %v1097 = vpop.permute.xlu0 %1096
        %1098 = vrot.lane.b32.xlu0 %v1042, 32
        %v1099 = vpop.permute.xlu0 %1098
        %1100 = vrot.lane.b32.xlu0 %v1049, 32
        %v1101 = vpop.permute.xlu0 %1100
        %1102 = vrot.lane.b32.xlu0 %v1056, 32
        %v1103 = vpop.permute.xlu0 %1102
        %1104 = vrot.lane.b32.xlu0 %v1063, 32
        %v1105 = vpop.permute.xlu0 %1104
        %1106 = vrot.lane.b32.xlu0 %v1070, 32
        %v1107 = vpop.permute.xlu0 %1106
        %1108 = vrot.lane.b32.xlu0 %v1077, 32
        %v1109 = vpop.permute.xlu0 %1108
        %vm1110 = vcmask 1044480
        %v1111 = vrot.slane %v369, 3
        %v1112 = vrot.slane %v417, 3
        %v1113 = vsel %vm1110, %v1111, %v1112
        %v1114 = vrot.slane %v370, 3
        %v1115 = vrot.slane %v418, 3
        %v1116 = vsel %vm1110, %v1114, %v1115
        %v1117 = vrot.slane %v371, 3
        %v1118 = vrot.slane %v419, 3
        %v1119 = vsel %vm1110, %v1117, %v1118
        %v1120 = vrot.slane %v372, 3
        %v1121 = vrot.slane %v420, 3
        %v1122 = vsel %vm1110, %v1120, %v1121
        %v1123 = vrot.slane %v373, 3
        %v1124 = vrot.slane %v421, 3
        %v1125 = vsel %vm1110, %v1123, %v1124
        %v1126 = vrot.slane %v374, 3
        %v1127 = vrot.slane %v422, 3
        %v1128 = vsel %vm1110, %v1126, %v1127
        %v1129 = vrot.slane %v375, 3
        %v1130 = vrot.slane %v423, 3
        %v1131 = vsel %vm1110, %v1129, %v1130
        %v1132 = vrot.slane %v376, 3
        %v1133 = vrot.slane %v424, 3
        %v1134 = vsel %vm1110, %v1132, %v1133
        %v1135 = vrot.slane %v377, 3
        %v1136 = vrot.slane %v425, 3
        %v1137 = vsel %vm1110, %v1135, %v1136
        %v1138 = vrot.slane %v378, 3
        %v1139 = vrot.slane %v426, 3
        %v1140 = vsel %vm1110, %v1138, %v1139
        %v1141 = vrot.slane %v379, 3
        %v1142 = vrot.slane %v427, 3
        %v1143 = vsel %vm1110, %v1141, %v1142
        %v1144 = vrot.slane %v380, 3
        %v1145 = vrot.slane %v428, 3
        %v1146 = vsel %vm1110, %v1144, %v1145
        %v1147 = vrot.slane %v381, 3
        %v1148 = vrot.slane %v429, 3
        %v1149 = vsel %vm1110, %v1147, %v1148
        %v1150 = vrot.slane %v382, 3
        %v1151 = vrot.slane %v430, 3
        %v1152 = vsel %vm1110, %v1150, %v1151
        %v1153 = vrot.slane %v383, 3
        %v1154 = vrot.slane %v431, 3
        %v1155 = vsel %vm1110, %v1153, %v1154
        %v1156 = vrot.slane %v384, 3
        %v1157 = vrot.slane %v432, 3
        %v1158 = vsel %vm1110, %v1156, %v1157
        %1159 = vrot.lane.b32.xlu0 %v1113, 64
        %v1160 = vpop.permute.xlu0 %1159
        %1161 = vrot.lane.b32.xlu0 %v1116, 64
        %v1162 = vpop.permute.xlu0 %1161
        %1163 = vrot.lane.b32.xlu0 %v1119, 64
        %v1164 = vpop.permute.xlu0 %1163
        %1165 = vrot.lane.b32.xlu0 %v1122, 64
        %v1166 = vpop.permute.xlu0 %1165
        %1167 = vrot.lane.b32.xlu0 %v1125, 64
        %v1168 = vpop.permute.xlu0 %1167
        %1169 = vrot.lane.b32.xlu0 %v1128, 64
        %v1170 = vpop.permute.xlu0 %1169
        %1171 = vrot.lane.b32.xlu0 %v1131, 64
        %v1172 = vpop.permute.xlu0 %1171
        %1173 = vrot.lane.b32.xlu0 %v1134, 64
        %v1174 = vpop.permute.xlu0 %1173
        %1175 = vrot.lane.b32.xlu0 %v1137, 64
        %v1176 = vpop.permute.xlu0 %1175
        %1177 = vrot.lane.b32.xlu0 %v1140, 64
        %v1178 = vpop.permute.xlu0 %1177
        %1179 = vrot.lane.b32.xlu0 %v1143, 64
        %v1180 = vpop.permute.xlu0 %1179
        %1181 = vrot.lane.b32.xlu0 %v1146, 64
        %v1182 = vpop.permute.xlu0 %1181
        %1183 = vrot.lane.b32.xlu0 %v1149, 64
        %v1184 = vpop.permute.xlu0 %1183
        %1185 = vrot.lane.b32.xlu0 %v1152, 64
        %v1186 = vpop.permute.xlu0 %1185
        %1187 = vrot.lane.b32.xlu0 %v1155, 64
        %v1188 = vpop.permute.xlu0 %1187
        %1189 = vrot.lane.b32.xlu0 %v1158, 64
        %v1190 = vpop.permute.xlu0 %1189
        %vm1191 = vsmask.f32 4352
        %v1192 = vrot.slane %v435, 3
        %v1193 = vrot.slane %v437, 4
        %v1194 = vor.u32 %v1192, %v1193
        %v1195 = vrot.slane %v743, 3
        %v1196 = vrot.slane %v442, 4
        %v1197 = vor.u32 %v1195, %v1196
        %v1198 = vsel %vm1191, %v1194, %v1197
        %v1199 = vrot.slane %v447, 3
        %v1200 = vrot.slane %v449, 4
        %v1201 = vor.u32 %v1199, %v1200
        %v1202 = vrot.slane %v752, 3
        %v1203 = vrot.slane %v454, 4
        %v1204 = vor.u32 %v1202, %v1203
        %v1205 = vsel %vm1191, %v1201, %v1204
        %v1206 = vrot.slane %v459, 3
        %v1207 = vrot.slane %v461, 4
        %v1208 = vor.u32 %v1206, %v1207
        %v1209 = vrot.slane %v761, 3
        %v1210 = vrot.slane %v466, 4
        %v1211 = vor.u32 %v1209, %v1210
        %v1212 = vsel %vm1191, %v1208, %v1211
        %v1213 = vrot.slane %v471, 3
        %v1214 = vrot.slane %v473, 4
        %v1215 = vor.u32 %v1213, %v1214
        %v1216 = vrot.slane %v770, 3
        %v1217 = vrot.slane %v478, 4
        %v1218 = vor.u32 %v1216, %v1217
        %v1219 = vsel %vm1191, %v1215, %v1218
        %v1220 = vrot.slane %v483, 3
        %v1221 = vrot.slane %v485, 4
        %v1222 = vor.u32 %v1220, %v1221
        %v1223 = vrot.slane %v779, 3
        %v1224 = vrot.slane %v490, 4
        %v1225 = vor.u32 %v1223, %v1224
        %v1226 = vsel %vm1191, %v1222, %v1225
        %v1227 = vrot.slane %v495, 3
        %v1228 = vrot.slane %v497, 4
        %v1229 = vor.u32 %v1227, %v1228
        %v1230 = vrot.slane %v788, 3
        %v1231 = vrot.slane %v502, 4
        %v1232 = vor.u32 %v1230, %v1231
        %v1233 = vsel %vm1191, %v1229, %v1232
        %v1234 = vrot.slane %v507, 3
        %v1235 = vrot.slane %v509, 4
        %v1236 = vor.u32 %v1234, %v1235
        %v1237 = vrot.slane %v797, 3
        %v1238 = vrot.slane %v514, 4
        %v1239 = vor.u32 %v1237, %v1238
        %v1240 = vsel %vm1191, %v1236, %v1239
        %v1241 = vrot.slane %v519, 3
        %v1242 = vrot.slane %v521, 4
        %v1243 = vor.u32 %v1241, %v1242
        %v1244 = vrot.slane %v806, 3
        %v1245 = vrot.slane %v526, 4
        %v1246 = vor.u32 %v1244, %v1245
        %v1247 = vsel %vm1191, %v1243, %v1246
        %v1248 = vrot.slane %v531, 3
        %v1249 = vrot.slane %v533, 4
        %v1250 = vor.u32 %v1248, %v1249
        %v1251 = vrot.slane %v815, 3
        %v1252 = vrot.slane %v538, 4
        %v1253 = vor.u32 %v1251, %v1252
        %v1254 = vsel %vm1191, %v1250, %v1253
        %v1255 = vrot.slane %v543, 3
        %v1256 = vrot.slane %v545, 4
        %v1257 = vor.u32 %v1255, %v1256
        %v1258 = vrot.slane %v824, 3
        %v1259 = vrot.slane %v550, 4
        %v1260 = vor.u32 %v1258, %v1259
        %v1261 = vsel %vm1191, %v1257, %v1260
        %v1262 = vrot.slane %v555, 3
        %v1263 = vrot.slane %v557, 4
        %v1264 = vor.u32 %v1262, %v1263
        %v1265 = vrot.slane %v833, 3
        %v1266 = vrot.slane %v562, 4
        %v1267 = vor.u32 %v1265, %v1266
        %v1268 = vsel %vm1191, %v1264, %v1267
        %v1269 = vrot.slane %v567, 3
        %v1270 = vrot.slane %v569, 4
        %v1271 = vor.u32 %v1269, %v1270
        %v1272 = vrot.slane %v842, 3
        %v1273 = vrot.slane %v574, 4
        %v1274 = vor.u32 %v1272, %v1273
        %v1275 = vsel %vm1191, %v1271, %v1274
        %v1276 = vrot.slane %v579, 3
        %v1277 = vrot.slane %v581, 4
        %v1278 = vor.u32 %v1276, %v1277
        %v1279 = vrot.slane %v851, 3
        %v1280 = vrot.slane %v586, 4
        %v1281 = vor.u32 %v1279, %v1280
        %v1282 = vsel %vm1191, %v1278, %v1281
        %v1283 = vrot.slane %v591, 3
        %v1284 = vrot.slane %v593, 4
        %v1285 = vor.u32 %v1283, %v1284
        %v1286 = vrot.slane %v860, 3
        %v1287 = vrot.slane %v598, 4
        %v1288 = vor.u32 %v1286, %v1287
        %v1289 = vsel %vm1191, %v1285, %v1288
        %v1290 = vrot.slane %v603, 3
        %v1291 = vrot.slane %v605, 4
        %v1292 = vor.u32 %v1290, %v1291
        %v1293 = vrot.slane %v869, 3
        %v1294 = vrot.slane %v610, 4
        %v1295 = vor.u32 %v1293, %v1294
        %v1296 = vsel %vm1191, %v1292, %v1295
        %v1297 = vrot.slane %v615, 3
        %v1298 = vrot.slane %v617, 4
        %v1299 = vor.u32 %v1297, %v1298
        %v1300 = vrot.slane %v878, 3
        %v1301 = vrot.slane %v622, 4
        %v1302 = vor.u32 %v1300, %v1301
        %v1303 = vsel %vm1191, %v1299, %v1302
        %1304 = vrot.lane.b32.xlu0 %v1198, 96
        %v1305 = vpop.permute.xlu0 %1304
        %1306 = vrot.lane.b32.xlu0 %v1205, 96
        %v1307 = vpop.permute.xlu0 %1306
        %1308 = vrot.lane.b32.xlu0 %v1212, 96
        %v1309 = vpop.permute.xlu0 %1308
        %1310 = vrot.lane.b32.xlu0 %v1219, 96
        %v1311 = vpop.permute.xlu0 %1310
        %1312 = vrot.lane.b32.xlu0 %v1226, 96
        %v1313 = vpop.permute.xlu0 %1312
        %1314 = vrot.lane.b32.xlu0 %v1233, 96
        %v1315 = vpop.permute.xlu0 %1314
        %1316 = vrot.lane.b32.xlu0 %v1240, 96
        %v1317 = vpop.permute.xlu0 %1316
        %1318 = vrot.lane.b32.xlu0 %v1247, 96
        %v1319 = vpop.permute.xlu0 %1318
        %1320 = vrot.lane.b32.xlu0 %v1254, 96
        %v1321 = vpop.permute.xlu0 %1320
        %1322 = vrot.lane.b32.xlu0 %v1261, 96
        %v1323 = vpop.permute.xlu0 %1322
        %1324 = vrot.lane.b32.xlu0 %v1268, 96
        %v1325 = vpop.permute.xlu0 %1324
        %1326 = vrot.lane.b32.xlu0 %v1275, 96
        %v1327 = vpop.permute.xlu0 %1326
        %1328 = vrot.lane.b32.xlu0 %v1282, 96
        %v1329 = vpop.permute.xlu0 %1328
        %1330 = vrot.lane.b32.xlu0 %v1289, 96
        %v1331 = vpop.permute.xlu0 %1330
        %1332 = vrot.lane.b32.xlu0 %v1296, 96
        %v1333 = vpop.permute.xlu0 %1332
        %1334 = vrot.lane.b32.xlu0 %v1303, 96
        %v1335 = vpop.permute.xlu0 %1334
        %vm1336 = vcmask 261120
        %v1338 = vsel %vm1336, %v369, %v627
        %v1340 = vsel %vm1336, %v370, %v629
        %v1342 = vsel %vm1336, %v371, %v631
        %v1344 = vsel %vm1336, %v372, %v633
        %v1346 = vsel %vm1336, %v373, %v635
        %v1348 = vsel %vm1336, %v374, %v637
        %v1350 = vsel %vm1336, %v375, %v639
        %v1352 = vsel %vm1336, %v376, %v641
        %v1354 = vsel %vm1336, %v377, %v643
        %v1356 = vsel %vm1336, %v378, %v645
        %v1358 = vsel %vm1336, %v379, %v647
        %v1360 = vsel %vm1336, %v380, %v649
        %v1362 = vsel %vm1336, %v381, %v651
        %v1364 = vsel %vm1336, %v382, %v653
        %v1366 = vsel %vm1336, %v383, %v655
        %v1368 = vsel %vm1336, %v384, %v657
        %vm1369 = vcmask 523264
        %v1371 = vsel %vm1369, %v1338, %v708
        %v1373 = vsel %vm1369, %v1340, %v710
        %v1375 = vsel %vm1369, %v1342, %v712
        %v1377 = vsel %vm1369, %v1344, %v714
        %v1379 = vsel %vm1369, %v1346, %v716
        %v1381 = vsel %vm1369, %v1348, %v718
        %v1383 = vsel %vm1369, %v1350, %v720
        %v1385 = vsel %vm1369, %v1352, %v722
        %v1387 = vsel %vm1369, %v1354, %v724
        %v1389 = vsel %vm1369, %v1356, %v726
        %v1391 = vsel %vm1369, %v1358, %v728
        %v1393 = vsel %vm1369, %v1360, %v730
        %v1395 = vsel %vm1369, %v1362, %v732
        %v1397 = vsel %vm1369, %v1364, %v734
        %v1399 = vsel %vm1369, %v1366, %v736
        %v1401 = vsel %vm1369, %v1368, %v738
        %vm1402 = vcmask 785408
        %v1404 = vsel %vm1402, %v1371, %v885
        %v1407 = vsel %vm1402, %v1373, %v887
        %v1410 = vsel %vm1402, %v1375, %v889
        %v1413 = vsel %vm1402, %v1377, %v891
        %v1416 = vsel %vm1402, %v1379, %v893
        %v1419 = vsel %vm1402, %v1381, %v895
        %v1422 = vsel %vm1402, %v1383, %v897
        %v1425 = vsel %vm1402, %v1385, %v899
        %v1428 = vsel %vm1402, %v1387, %v901
        %v1431 = vsel %vm1402, %v1389, %v903
        %v1434 = vsel %vm1402, %v1391, %v905
        %v1437 = vsel %vm1402, %v1393, %v907
        %v1440 = vsel %vm1402, %v1395, %v909
        %v1443 = vsel %vm1402, %v1397, %v911
        %v1446 = vsel %vm1402, %v1399, %v913
        %v1449 = vsel %vm1402, %v1401, %v915
        %v1453 = vsel %vm1336, %v919, %v1079
        %v1456 = vsel %vm1336, %v922, %v1081
        %v1459 = vsel %vm1336, %v925, %v1083
        %v1462 = vsel %vm1336, %v928, %v1085
        %v1465 = vsel %vm1336, %v931, %v1087
        %v1468 = vsel %vm1336, %v934, %v1089
        %v1471 = vsel %vm1336, %v937, %v1091
        %v1474 = vsel %vm1336, %v940, %v1093
        %v1477 = vsel %vm1336, %v943, %v1095
        %v1480 = vsel %vm1336, %v946, %v1097
        %v1483 = vsel %vm1336, %v949, %v1099
        %v1486 = vsel %vm1336, %v952, %v1101
        %v1489 = vsel %vm1336, %v955, %v1103
        %v1492 = vsel %vm1336, %v958, %v1105
        %v1495 = vsel %vm1336, %v961, %v1107
        %v1498 = vsel %vm1336, %v964, %v1109
        %v1500 = vsel %vm1369, %v1453, %v1160
        %v1502 = vsel %vm1369, %v1456, %v1162
        %v1504 = vsel %vm1369, %v1459, %v1164
        %v1506 = vsel %vm1369, %v1462, %v1166
        %v1508 = vsel %vm1369, %v1465, %v1168
        %v1510 = vsel %vm1369, %v1468, %v1170
        %v1512 = vsel %vm1369, %v1471, %v1172
        %v1514 = vsel %vm1369, %v1474, %v1174
        %v1516 = vsel %vm1369, %v1477, %v1176
        %v1518 = vsel %vm1369, %v1480, %v1178
        %v1520 = vsel %vm1369, %v1483, %v1180
        %v1522 = vsel %vm1369, %v1486, %v1182
        %v1524 = vsel %vm1369, %v1489, %v1184
        %v1526 = vsel %vm1369, %v1492, %v1186
        %v1528 = vsel %vm1369, %v1495, %v1188
        %v1530 = vsel %vm1369, %v1498, %v1190
        %v1532 = vsel %vm1402, %v1500, %v1305
        %v1535 = vsel %vm1402, %v1502, %v1307
        %v1538 = vsel %vm1402, %v1504, %v1309
        %v1541 = vsel %vm1402, %v1506, %v1311
        %v1544 = vsel %vm1402, %v1508, %v1313
        %v1547 = vsel %vm1402, %v1510, %v1315
        %v1550 = vsel %vm1402, %v1512, %v1317
        %v1553 = vsel %vm1402, %v1514, %v1319
        %v1556 = vsel %vm1402, %v1516, %v1321
        %v1559 = vsel %vm1402, %v1518, %v1323
        %v1562 = vsel %vm1402, %v1520, %v1325
        %v1565 = vsel %vm1402, %v1522, %v1327
        %v1568 = vsel %vm1402, %v1524, %v1329
        %v1571 = vsel %vm1402, %v1526, %v1331
        %v1574 = vsel %vm1402, %v1528, %v1333
        %v1577 = vsel %vm1402, %v1530, %v1335
        %v1579 = vld [vmem:[%s1] sm:$0xf]
        %v1580 = vld [vmem:[%s1 + $0x4] sm:$0xf]
        %v1581 = vld [vmem:[%s1 + $0x8] sm:$0xf]
        %v1582 = vld [vmem:[%s1 + $0xc] sm:$0xf]
        %v1583 = vld [vmem:[%s1 + $0x10] sm:$0xf]
        %v1584 = vld [vmem:[%s1 + $0x14] sm:$0xf]
        %v1585 = vld [vmem:[%s1 + $0x18] sm:$0xf]
        %v1586 = vld [vmem:[%s1 + $0x1c] sm:$0xf]
        %v1587 = vld [vmem:[%s1 + $0x20] sm:$0xf]
        %v1588 = vld [vmem:[%s1 + $0x24] sm:$0xf]
        %v1589 = vld [vmem:[%s1 + $0x28] sm:$0xf]
        %v1590 = vld [vmem:[%s1 + $0x2c] sm:$0xf]
        %v1591 = vld [vmem:[%s1 + $0x30] sm:$0xf]
        %v1592 = vld [vmem:[%s1 + $0x34] sm:$0xf]
        %v1593 = vld [vmem:[%s1 + $0x38] sm:$0xf]
        %v1594 = vld [vmem:[%s1 + $0x3c] sm:$0xf]
        %v1595 = vld [vmem:[%s1 + $0x40] sm:$0xf]
        %v1596 = vld [vmem:[%s1 + $0x44] sm:$0xf]
        %v1597 = vld [vmem:[%s1 + $0x48] sm:$0xf]
        %v1598 = vld [vmem:[%s1 + $0x4c] sm:$0xf]
        %v1599 = vld [vmem:[%s1 + $0x50] sm:$0xf]
        %v1600 = vld [vmem:[%s1 + $0x54] sm:$0xf]
        %v1601 = vld [vmem:[%s1 + $0x58] sm:$0xf]
        %v1602 = vld [vmem:[%s1 + $0x5c] sm:$0xf]
        %v1603 = vld [vmem:[%s1 + $0x60] sm:$0xf]
        %v1604 = vld [vmem:[%s1 + $0x64] sm:$0xf]
        %v1605 = vld [vmem:[%s1 + $0x68] sm:$0xf]
        %v1606 = vld [vmem:[%s1 + $0x6c] sm:$0xf]
        %v1607 = vld [vmem:[%s1 + $0x70] sm:$0xf]
        %v1608 = vld [vmem:[%s1 + $0x74] sm:$0xf]
        %v1609 = vld [vmem:[%s1 + $0x78] sm:$0xf]
        %v1610 = vld [vmem:[%s1 + $0x7c] sm:$0xf]
        %v1611 = vld [vmem:[%s2] sm:$0x1]
        %v1613 = vlaneseq
        %v1614 = vshrl.u32 %v1613, 7
        %v1615 = vsub.s32 0, %v1614
        %v1616 = vrot.slane %v1611, %v1615
        %v1650 = vunpack.c.l.b16 %v1579
        %v1651 = vunpack.c.l.b16 %v1580
        %v1652 = vunpack.c.l.b16 %v1581
        %v1653 = vunpack.c.l.b16 %v1582
        %v1654 = vunpack.c.l.b16 %v1583
        %v1655 = vunpack.c.l.b16 %v1584
        %v1656 = vunpack.c.l.b16 %v1585
        %v1657 = vunpack.c.l.b16 %v1586
        %v1658 = vunpack.c.l.b16 %v1587
        %v1659 = vunpack.c.l.b16 %v1588
        %v1660 = vunpack.c.l.b16 %v1589
        %v1661 = vunpack.c.l.b16 %v1590
        %v1662 = vunpack.c.l.b16 %v1591
        %v1663 = vunpack.c.l.b16 %v1592
        %v1664 = vunpack.c.l.b16 %v1593
        %v1665 = vunpack.c.l.b16 %v1594
        %v1666 = vunpack.c.l.b16 %v1595
        %v1667 = vunpack.c.l.b16 %v1596
        %v1668 = vunpack.c.l.b16 %v1597
        %v1669 = vunpack.c.l.b16 %v1598
        %v1670 = vunpack.c.l.b16 %v1599
        %v1671 = vunpack.c.l.b16 %v1600
        %v1672 = vunpack.c.l.b16 %v1601
        %v1673 = vunpack.c.l.b16 %v1602
        %v1674 = vunpack.c.l.b16 %v1603
        %v1675 = vunpack.c.l.b16 %v1604
        %v1676 = vunpack.c.l.b16 %v1605
        %v1677 = vunpack.c.l.b16 %v1606
        %v1678 = vunpack.c.l.b16 %v1607
        %v1679 = vunpack.c.l.b16 %v1608
        %v1680 = vunpack.c.l.b16 %v1609
        %v1681 = vunpack.c.l.b16 %v1610
        %v1682 = vpack.c.b16 %v1651, %v1650
        %v1683 = vpack.c.b16 %v1653, %v1652
        %v1684 = vpack.c.b16 %v1655, %v1654
        %v1685 = vpack.c.b16 %v1657, %v1656
        %v1686 = vpack.c.b16 %v1659, %v1658
        %v1687 = vpack.c.b16 %v1661, %v1660
        %v1688 = vpack.c.b16 %v1663, %v1662
        %v1689 = vpack.c.b16 %v1665, %v1664
        %v1690 = vpack.c.b16 %v1667, %v1666
        %v1691 = vpack.c.b16 %v1669, %v1668
        %v1692 = vpack.c.b16 %v1671, %v1670
        %v1693 = vpack.c.b16 %v1673, %v1672
        %v1694 = vpack.c.b16 %v1675, %v1674
        %v1695 = vpack.c.b16 %v1677, %v1676
        %v1696 = vpack.c.b16 %v1679, %v1678
        %v1697 = vpack.c.b16 %v1681, %v1680
        %1714 = vmatprep.subr.bf16.mxu0 0
        %1715 = vmatpush1.bf16.msra.mxu0 %v1682
        %1716 = vmatprep.subr.bf16.mxu0 0
        %1717 = vmatpush1.bf16.msra.mxu0 %v1683
        %1718 = vmatprep.subr.bf16.mxu0 0
        %1719 = vmatpush1.bf16.msra.mxu0 %v1684
        %1720 = vmatprep.subr.bf16.mxu0 0
        %1721 = vmatpush1.bf16.msra.mxu0 %v1685
        %1722 = vmatprep.subr.bf16.mxu0 0
        %1723 = vmatpush1.bf16.msra.mxu0 %v1686
        %1724 = vmatprep.subr.bf16.mxu0 0
        %1725 = vmatpush1.bf16.msra.mxu0 %v1687
        %1726 = vmatprep.subr.bf16.mxu0 0
        %1727 = vmatpush1.bf16.msra.mxu0 %v1688
        %1728 = vmatprep.subr.bf16.mxu0 0
        %1729 = vmatpush1.bf16.msra.mxu0 %v1689
        %1730 = vmatprep.subr.bf16.mxu0 0
        %1731 = vmatpush1.bf16.msra.mxu0 %v1690
        %1732 = vmatprep.subr.bf16.mxu0 0
        %1733 = vmatpush1.bf16.msra.mxu0 %v1691
        %1734 = vmatprep.subr.bf16.mxu0 0
        %1735 = vmatpush1.bf16.msra.mxu0 %v1692
        %1736 = vmatprep.subr.bf16.mxu0 0
        %1737 = vmatpush1.bf16.msra.mxu0 %v1693
        %1738 = vmatprep.subr.bf16.mxu0 0
        %1739 = vmatpush1.bf16.msra.mxu0 %v1694
        %1740 = vmatprep.subr.bf16.mxu0 0
        %1741 = vmatpush1.bf16.msra.mxu0 %v1695
        %1742 = vmatprep.subr.bf16.mxu0 0
        %1743 = vmatpush1.bf16.msra.mxu0 %v1696
        %1744 = vmatprep.subr.bf16.mxu0 0
        %1745 = vmatpush1.bf16.msra.mxu0 %v1697
        %1746 = vmatprep.mubr.bf16.mxu0 %v1532
        %1747 = vmatmul.mubr.bf16.gmra.mrb[0].mxu0 %v1404
        %v1748 = vpop.f32.mrb[0].mxu0
        %v1749 = vadd.f32 %v1616, %v1748
        %v1750 = vpop.f32.mrb[0].mxu0
        %v1751 = vpop.f32.mrb[0].mxu0
        %v1752 = vadd.f32 %v1616, %v1751
        %v1753 = vpop.f32.mrb[0].mxu0
        %1754 = vmatprep.mubr.bf16.mxu0 %v1535
        %1755 = vmatmul.mubr.bf16.gmra.mrb[0].mxu0 %v1407
        %v1756 = vpop.f32.mrb[0].mxu0
        %v1757 = vadd.f32 %v1616, %v1756
        %v1758 = vpop.f32.mrb[0].mxu0
        %v1759 = vpop.f32.mrb[0].mxu0
        %v1760 = vadd.f32 %v1616, %v1759
        %v1761 = vpop.f32.mrb[0].mxu0
        %1762 = vmatprep.mubr.bf16.mxu0 %v1538
        %1763 = vmatmul.mubr.bf16.gmra.mrb[0].mxu0 %v1410
        %v1764 = vpop.f32.mrb[0].mxu0
        %v1765 = vadd.f32 %v1616, %v1764
        %v1766 = vpop.f32.mrb[0].mxu0
        %v1767 = vpop.f32.mrb[0].mxu0
        %v1768 = vadd.f32 %v1616, %v1767
        %v1769 = vpop.f32.mrb[0].mxu0
        %1770 = vmatprep.mubr.bf16.mxu0 %v1541
        %1771 = vmatmul.mubr.bf16.gmra.mrb[0].mxu0 %v1413
        %v1772 = vpop.f32.mrb[0].mxu0
        %v1773 = vadd.f32 %v1616, %v1772
        %v1774 = vpop.f32.mrb[0].mxu0
        %v1775 = vpop.f32.mrb[0].mxu0
        %v1776 = vadd.f32 %v1616, %v1775
        %v1777 = vpop.f32.mrb[0].mxu0
        %1778 = vmatprep.mubr.bf16.mxu0 %v1544
        %1779 = vmatmul.mubr.bf16.gmra.mrb[0].mxu0 %v1416
        %v1780 = vpop.f32.mrb[0].mxu0
        %v1781 = vadd.f32 %v1616, %v1780
        %v1782 = vpop.f32.mrb[0].mxu0
        %v1783 = vpop.f32.mrb[0].mxu0
        %v1784 = vadd.f32 %v1616, %v1783
        %v1785 = vpop.f32.mrb[0].mxu0
        %1786 = vmatprep.mubr.bf16.mxu0 %v1547
        %1787 = vmatmul.mubr.bf16.gmra.mrb[0].mxu0 %v1419
        %v1788 = vpop.f32.mrb[0].mxu0
        %v1789 = vadd.f32 %v1616, %v1788
        %v1790 = vpop.f32.mrb[0].mxu0
        %v1791 = vpop.f32.mrb[0].mxu0
        %v1792 = vadd.f32 %v1616, %v1791
        %v1793 = vpop.f32.mrb[0].mxu0
        %1794 = vmatprep.mubr.bf16.mxu0 %v1550
        %1795 = vmatmul.mubr.bf16.gmra.mrb[0].mxu0 %v1422
        %v1796 = vpop.f32.mrb[0].mxu0
        %v1797 = vadd.f32 %v1616, %v1796
        %v1798 = vpop.f32.mrb[0].mxu0
        %v1799 = vpop.f32.mrb[0].mxu0
        %v1800 = vadd.f32 %v1616, %v1799
        %v1801 = vpop.f32.mrb[0].mxu0
        %1802 = vmatprep.mubr.bf16.mxu0 %v1553
        %1803 = vmatmul.mubr.bf16.gmra.mrb[0].mxu0 %v1425
        %v1804 = vpop.f32.mrb[0].mxu0
        %v1805 = vadd.f32 %v1616, %v1804
        %v1806 = vpop.f32.mrb[0].mxu0
        %v1807 = vpop.f32.mrb[0].mxu0
        %v1808 = vadd.f32 %v1616, %v1807
        %v1809 = vpop.f32.mrb[0].mxu0
        %1810 = vmatprep.mubr.bf16.mxu0 %v1556
        %1811 = vmatmul.mubr.bf16.gmra.mrb[0].mxu0 %v1428
        %v1812 = vpop.f32.mrb[0].mxu0
        %v1813 = vadd.f32 %v1616, %v1812
        %v1814 = vpop.f32.mrb[0].mxu0
        %v1815 = vpop.f32.mrb[0].mxu0
        %v1816 = vadd.f32 %v1616, %v1815
        %v1817 = vpop.f32.mrb[0].mxu0
        %1818 = vmatprep.mubr.bf16.mxu0 %v1559
        %1819 = vmatmul.mubr.bf16.gmra.mrb[0].mxu0 %v1431
        %v1820 = vpop.f32.mrb[0].mxu0
        %v1821 = vadd.f32 %v1616, %v1820
        %v1822 = vpop.f32.mrb[0].mxu0
        %v1823 = vpop.f32.mrb[0].mxu0
        %v1824 = vadd.f32 %v1616, %v1823
        %v1825 = vpop.f32.mrb[0].mxu0
        %1826 = vmatprep.mubr.bf16.mxu0 %v1562
        %1827 = vmatmul.mubr.bf16.gmra.mrb[0].mxu0 %v1434
        %v1828 = vpop.f32.mrb[0].mxu0
        %v1829 = vadd.f32 %v1616, %v1828
        %v1830 = vpop.f32.mrb[0].mxu0
        %v1831 = vpop.f32.mrb[0].mxu0
        %v1832 = vadd.f32 %v1616, %v1831
        %v1833 = vpop.f32.mrb[0].mxu0
        %1834 = vmatprep.mubr.bf16.mxu0 %v1565
        %1835 = vmatmul.mubr.bf16.gmra.mrb[0].mxu0 %v1437
        %v1836 = vpop.f32.mrb[0].mxu0
        %v1837 = vadd.f32 %v1616, %v1836
        %v1838 = vpop.f32.mrb[0].mxu0
        %v1839 = vpop.f32.mrb[0].mxu0
        %v1840 = vadd.f32 %v1616, %v1839
        %v1841 = vpop.f32.mrb[0].mxu0
        %1842 = vmatprep.mubr.bf16.mxu0 %v1568
        %1843 = vmatmul.mubr.bf16.gmra.mrb[0].mxu0 %v1440
        %v1844 = vpop.f32.mrb[0].mxu0
        %v1845 = vadd.f32 %v1616, %v1844
        %v1846 = vpop.f32.mrb[0].mxu0
        %v1847 = vpop.f32.mrb[0].mxu0
        %v1848 = vadd.f32 %v1616, %v1847
        %v1849 = vpop.f32.mrb[0].mxu0
        %1850 = vmatprep.mubr.bf16.mxu0 %v1571
        %1851 = vmatmul.mubr.bf16.gmra.mrb[0].mxu0 %v1443
        %v1852 = vpop.f32.mrb[0].mxu0
        %v1853 = vadd.f32 %v1616, %v1852
        %v1854 = vpop.f32.mrb[0].mxu0
        %v1855 = vpop.f32.mrb[0].mxu0
        %v1856 = vadd.f32 %v1616, %v1855
        %v1857 = vpop.f32.mrb[0].mxu0
        %1858 = vmatprep.mubr.bf16.mxu0 %v1574
        %1859 = vmatmul.mubr.bf16.gmra.mrb[0].mxu0 %v1446
        %v1860 = vpop.f32.mrb[0].mxu0
        %v1861 = vadd.f32 %v1616, %v1860
        %v1862 = vpop.f32.mrb[0].mxu0
        %v1863 = vpop.f32.mrb[0].mxu0
        %v1864 = vadd.f32 %v1616, %v1863
        %v1865 = vpop.f32.mrb[0].mxu0
        %1866 = vmatprep.mubr.bf16.mxu0 %v1577
        %1867 = vmatmul.mubr.bf16.gmra.mrb[0].mxu0 %v1449
        %v1868 = vpop.f32.mrb[0].mxu0
        %v1869 = vadd.f32 %v1616, %v1868
        %v1870 = vpop.f32.mrb[0].mxu0
        %v1871 = vpop.f32.mrb[0].mxu0
        %v1872 = vadd.f32 %v1616, %v1871
        %v1873 = vpop.f32.mrb[0].mxu0
        %1874 = vdwg.mxu0
        %v1875 = vmax.f32 %v1749, 0.0
        %v1876 = vmax.f32 %v1752, 0.0
        %v1877 = vmax.f32 %v1757, 0.0
        %v1878 = vmax.f32 %v1760, 0.0
        %v1879 = vmax.f32 %v1765, 0.0
        %v1880 = vmax.f32 %v1768, 0.0
        %v1881 = vmax.f32 %v1773, 0.0
        %v1882 = vmax.f32 %v1776, 0.0
        %v1883 = vmax.f32 %v1781, 0.0
        %v1884 = vmax.f32 %v1784, 0.0
        %v1885 = vmax.f32 %v1789, 0.0
        %v1886 = vmax.f32 %v1792, 0.0
        %v1887 = vmax.f32 %v1797, 0.0
        %v1888 = vmax.f32 %v1800, 0.0
        %v1889 = vmax.f32 %v1805, 0.0
        %v1890 = vmax.f32 %v1808, 0.0
        %v1891 = vmax.f32 %v1813, 0.0
        %v1892 = vmax.f32 %v1816, 0.0
        %v1893 = vmax.f32 %v1821, 0.0
        %v1894 = vmax.f32 %v1824, 0.0
        %v1895 = vmax.f32 %v1829, 0.0
        %v1896 = vmax.f32 %v1832, 0.0
        %v1897 = vmax.f32 %v1837, 0.0
        %v1898 = vmax.f32 %v1840, 0.0
        %v1899 = vmax.f32 %v1845, 0.0
        %v1900 = vmax.f32 %v1848, 0.0
        %v1901 = vmax.f32 %v1853, 0.0
        %v1902 = vmax.f32 %v1856, 0.0
        %v1903 = vmax.f32 %v1861, 0.0
        %v1904 = vmax.f32 %v1864, 0.0
        %v1905 = vmax.f32 %v1869, 0.0
        %v1906 = vmax.f32 %v1872, 0.0
        %v1907 = vld [vmem:[%s3] sm:$0xff]
        %v1908 = vld [vmem:[%s3 + $0x8] sm:$0xff]
        %v1909 = vmul.f32 %v1875, %v1907
        %v1910 = vmul.f32 %v1876, %v1908
        %v1911 = vmul.f32 %v1877, %v1907
        %v1912 = vmul.f32 %v1878, %v1908
        %v1913 = vmul.f32 %v1879, %v1907
        %v1914 = vmul.f32 %v1880, %v1908
        %v1915 = vmul.f32 %v1881, %v1907
        %v1916 = vmul.f32 %v1882, %v1908
        %v1917 = vmul.f32 %v1883, %v1907
        %v1918 = vmul.f32 %v1884, %v1908
        %v1919 = vmul.f32 %v1885, %v1907
        %v1920 = vmul.f32 %v1886, %v1908
        %v1921 = vmul.f32 %v1887, %v1907
        %v1922 = vmul.f32 %v1888, %v1908
        %v1923 = vmul.f32 %v1889, %v1907
        %v1924 = vmul.f32 %v1890, %v1908
        %v1925 = vmul.f32 %v1891, %v1907
        %v1926 = vmul.f32 %v1892, %v1908
        %v1927 = vmul.f32 %v1893, %v1907
        %v1928 = vmul.f32 %v1894, %v1908
        %v1929 = vmul.f32 %v1895, %v1907
        %v1930 = vmul.f32 %v1896, %v1908
        %v1931 = vmul.f32 %v1897, %v1907
        %v1932 = vmul.f32 %v1898, %v1908
        %v1933 = vmul.f32 %v1899, %v1907
        %v1934 = vmul.f32 %v1900, %v1908
        %v1935 = vmul.f32 %v1901, %v1907
        %v1936 = vmul.f32 %v1902, %v1908
        %v1937 = vmul.f32 %v1903, %v1907
        %v1938 = vmul.f32 %v1904, %v1908
        %v1939 = vmul.f32 %v1905, %v1907
        %v1940 = vmul.f32 %v1906, %v1908
        %v1941 = vmax.f32 %v1909, %v1910
        %v1942 = vrot.slane %v1941, 4
        %v1943 = vmax.f32 %v1941, %v1942
        %v1944 = vrot.slane %v1943, 2
        %v1945 = vmax.f32 %v1943, %v1944
        %v1946 = vrot.slane %v1945, 1
        %v1947 = vmax.f32 %v1945, %v1946
        %v1948 = vmax.f32 %v1911, %v1912
        %v1949 = vrot.slane %v1948, 4
        %v1950 = vmax.f32 %v1948, %v1949
        %v1951 = vrot.slane %v1950, 2
        %v1952 = vmax.f32 %v1950, %v1951
        %v1953 = vrot.slane %v1952, 1
        %v1954 = vmax.f32 %v1952, %v1953
        %v1955 = vmax.f32 %v1913, %v1914
        %v1956 = vrot.slane %v1955, 4
        %v1957 = vmax.f32 %v1955, %v1956
        %v1958 = vrot.slane %v1957, 2
        %v1959 = vmax.f32 %v1957, %v1958
        %v1960 = vrot.slane %v1959, 1
        %v1961 = vmax.f32 %v1959, %v1960
        %v1962 = vmax.f32 %v1915, %v1916
        %v1963 = vrot.slane %v1962, 4
        %v1964 = vmax.f32 %v1962, %v1963
        %v1965 = vrot.slane %v1964, 2
        %v1966 = vmax.f32 %v1964, %v1965
        %v1967 = vrot.slane %v1966, 1
        %v1968 = vmax.f32 %v1966, %v1967
        %v1969 = vmax.f32 %v1917, %v1918
        %v1970 = vrot.slane %v1969, 4
        %v1971 = vmax.f32 %v1969, %v1970
        %v1972 = vrot.slane %v1971, 2
        %v1973 = vmax.f32 %v1971, %v1972
        %v1974 = vrot.slane %v1973, 1
        %v1975 = vmax.f32 %v1973, %v1974
        %v1976 = vmax.f32 %v1919, %v1920
        %v1977 = vrot.slane %v1976, 4
        %v1978 = vmax.f32 %v1976, %v1977
        %v1979 = vrot.slane %v1978, 2
        %v1980 = vmax.f32 %v1978, %v1979
        %v1981 = vrot.slane %v1980, 1
        %v1982 = vmax.f32 %v1980, %v1981
        %v1983 = vmax.f32 %v1921, %v1922
        %v1984 = vrot.slane %v1983, 4
        %v1985 = vmax.f32 %v1983, %v1984
        %v1986 = vrot.slane %v1985, 2
        %v1987 = vmax.f32 %v1985, %v1986
        %v1988 = vrot.slane %v1987, 1
        %v1989 = vmax.f32 %v1987, %v1988
        %v1990 = vmax.f32 %v1923, %v1924
        %v1991 = vrot.slane %v1990, 4
        %v1992 = vmax.f32 %v1990, %v1991
        %v1993 = vrot.slane %v1992, 2
        %v1994 = vmax.f32 %v1992, %v1993
        %v1995 = vrot.slane %v1994, 1
        %v1996 = vmax.f32 %v1994, %v1995
        %v1997 = vmax.f32 %v1925, %v1926
        %v1998 = vrot.slane %v1997, 4
        %v1999 = vmax.f32 %v1997, %v1998
        %v2000 = vrot.slane %v1999, 2
        %v2001 = vmax.f32 %v1999, %v2000
        %v2002 = vrot.slane %v2001, 1
        %v2003 = vmax.f32 %v2001, %v2002
        %v2004 = vmax.f32 %v1927, %v1928
        %v2005 = vrot.slane %v2004, 4
        %v2006 = vmax.f32 %v2004, %v2005
        %v2007 = vrot.slane %v2006, 2
        %v2008 = vmax.f32 %v2006, %v2007
        %v2009 = vrot.slane %v2008, 1
        %v2010 = vmax.f32 %v2008, %v2009
        %v2011 = vmax.f32 %v1929, %v1930
        %v2012 = vrot.slane %v2011, 4
        %v2013 = vmax.f32 %v2011, %v2012
        %v2014 = vrot.slane %v2013, 2
        %v2015 = vmax.f32 %v2013, %v2014
        %v2016 = vrot.slane %v2015, 1
        %v2017 = vmax.f32 %v2015, %v2016
        %v2018 = vmax.f32 %v1931, %v1932
        %v2019 = vrot.slane %v2018, 4
        %v2020 = vmax.f32 %v2018, %v2019
        %v2021 = vrot.slane %v2020, 2
        %v2022 = vmax.f32 %v2020, %v2021
        %v2023 = vrot.slane %v2022, 1
        %v2024 = vmax.f32 %v2022, %v2023
        %v2025 = vmax.f32 %v1933, %v1934
        %v2026 = vrot.slane %v2025, 4
        %v2027 = vmax.f32 %v2025, %v2026
        %v2028 = vrot.slane %v2027, 2
        %v2029 = vmax.f32 %v2027, %v2028
        %v2030 = vrot.slane %v2029, 1
        %v2031 = vmax.f32 %v2029, %v2030
        %v2032 = vmax.f32 %v1935, %v1936
        %v2033 = vrot.slane %v2032, 4
        %v2034 = vmax.f32 %v2032, %v2033
        %v2035 = vrot.slane %v2034, 2
        %v2036 = vmax.f32 %v2034, %v2035
        %v2037 = vrot.slane %v2036, 1
        %v2038 = vmax.f32 %v2036, %v2037
        %v2039 = vmax.f32 %v1937, %v1938
        %v2040 = vrot.slane %v2039, 4
        %v2041 = vmax.f32 %v2039, %v2040
        %v2042 = vrot.slane %v2041, 2
        %v2043 = vmax.f32 %v2041, %v2042
        %v2044 = vrot.slane %v2043, 1
        %v2045 = vmax.f32 %v2043, %v2044
        %v2046 = vmax.f32 %v1939, %v1940
        %v2047 = vrot.slane %v2046, 4
        %v2048 = vmax.f32 %v2046, %v2047
        %v2049 = vrot.slane %v2048, 2
        %v2050 = vmax.f32 %v2048, %v2049
        %v2051 = vrot.slane %v2050, 1
        %v2052 = vmax.f32 %v2050, %v2051
        %v2053 = vpack.c.bf16 %v1947, %v1947
        %v2054 = vpack.c.bf16 %v1954, %v1954
        %v2055 = vpack.c.bf16 %v1961, %v1961
        %v2056 = vpack.c.bf16 %v1968, %v1968
        %v2057 = vpack.c.bf16 %v1975, %v1975
        %v2058 = vpack.c.bf16 %v1982, %v1982
        %v2059 = vpack.c.bf16 %v1989, %v1989
        %v2060 = vpack.c.bf16 %v1996, %v1996
        %v2061 = vpack.c.bf16 %v2003, %v2003
        %v2062 = vpack.c.bf16 %v2010, %v2010
        %v2063 = vpack.c.bf16 %v2017, %v2017
        %v2064 = vpack.c.bf16 %v2024, %v2024
        %v2065 = vpack.c.bf16 %v2031, %v2031
        %v2066 = vpack.c.bf16 %v2038, %v2038
        %v2067 = vpack.c.bf16 %v2045, %v2045
        %v2068 = vpack.c.bf16 %v2052, %v2052
        %v2069 = vld [vmem:[%s4] sm:$0xf]
        %v2070 = vld [vmem:[%s4 + $0x4] sm:$0xf]
        %v2071 = vld [vmem:[%s4 + $0x8] sm:$0xf]
        %v2072 = vld [vmem:[%s4 + $0xc] sm:$0xf]
        %v2073 = vld [vmem:[%s4 + $0x10] sm:$0xf]
        %v2074 = vld [vmem:[%s4 + $0x14] sm:$0xf]
        %v2075 = vld [vmem:[%s4 + $0x18] sm:$0xf]
        %v2076 = vld [vmem:[%s4 + $0x1c] sm:$0xf]
        %v2077 = vld [vmem:[%s4 + $0x20] sm:$0xf]
        %v2078 = vld [vmem:[%s4 + $0x24] sm:$0xf]
        %v2079 = vld [vmem:[%s4 + $0x28] sm:$0xf]
        %v2080 = vld [vmem:[%s4 + $0x2c] sm:$0xf]
        %v2081 = vld [vmem:[%s4 + $0x30] sm:$0xf]
        %v2082 = vld [vmem:[%s4 + $0x34] sm:$0xf]
        %v2083 = vld [vmem:[%s4 + $0x38] sm:$0xf]
        %v2084 = vld [vmem:[%s4 + $0x3c] sm:$0xf]
        %v2085 = vld [vmem:[%s5] sm:$0x1]
        %v2087 = vlaneseq
        %v2088 = vshrl.u32 %v2087, 7
        %v2089 = vsub.s32 0, %v2088
        %v2090 = vrot.slane %v2085, %v2089
        %v2108 = vunpack.c.l.b16 %v2053
        %v2109 = vunpack.c.l.b16 %v2054
        %v2110 = vunpack.c.l.b16 %v2055
        %v2111 = vunpack.c.l.b16 %v2056
        %v2112 = vunpack.c.l.b16 %v2057
        %v2113 = vunpack.c.l.b16 %v2058
        %v2114 = vunpack.c.l.b16 %v2059
        %v2115 = vunpack.c.l.b16 %v2060
        %v2116 = vunpack.c.l.b16 %v2061
        %v2117 = vunpack.c.l.b16 %v2062
        %v2118 = vunpack.c.l.b16 %v2063
        %v2119 = vunpack.c.l.b16 %v2064
        %v2120 = vunpack.c.l.b16 %v2065
        %v2121 = vunpack.c.l.b16 %v2066
        %v2122 = vunpack.c.l.b16 %v2067
        %v2123 = vunpack.c.l.b16 %v2068
        %vm2124 = vcmask 1041409
        %v2125 = vsel %vm2124, %v2109, %v2108
        %vm2126 = vcmask 1042434
        %v2127 = vsel %vm2126, %v2110, %v2125
        %vm2128 = vcmask 1043459
        %v2129 = vsel %vm2128, %v2111, %v2127
        %vm2130 = vcmask 1044484
        %v2131 = vsel %vm2130, %v2112, %v2129
        %vm2132 = vcmask 1045509
        %v2133 = vsel %vm2132, %v2113, %v2131
        %vm2134 = vcmask 1046534
        %v2135 = vsel %vm2134, %v2114, %v2133
        %vm2136 = vcmask 1047559
        %v2137 = vsel %vm2136, %v2115, %v2135
        %v2138 = vsel %vm2124, %v2117, %v2116
        %v2139 = vsel %vm2126, %v2118, %v2138
        %v2140 = vsel %vm2128, %v2119, %v2139
        %v2141 = vsel %vm2130, %v2120, %v2140
        %v2142 = vsel %vm2132, %v2121, %v2141
        %v2143 = vsel %vm2134, %v2122, %v2142
        %v2144 = vsel %vm2136, %v2123, %v2143
        %v2145 = vpack.c.b16 %v2144, %v2137
        %v2163 = vunpack.c.l.b16 %v2069
        %v2164 = vunpack.c.l.b16 %v2070
        %v2165 = vunpack.c.l.b16 %v2071
        %v2166 = vunpack.c.l.b16 %v2072
        %v2167 = vunpack.c.l.b16 %v2073
        %v2168 = vunpack.c.l.b16 %v2074
        %v2169 = vunpack.c.l.b16 %v2075
        %v2170 = vunpack.c.l.b16 %v2076
        %v2171 = vunpack.c.l.b16 %v2077
        %v2172 = vunpack.c.l.b16 %v2078
        %v2173 = vunpack.c.l.b16 %v2079
        %v2174 = vunpack.c.l.b16 %v2080
        %v2175 = vunpack.c.l.b16 %v2081
        %v2176 = vunpack.c.l.b16 %v2082
        %v2177 = vunpack.c.l.b16 %v2083
        %v2178 = vunpack.c.l.b16 %v2084
        %v2179 = vpack.c.b16 %v2164, %v2163
        %v2180 = vpack.c.b16 %v2166, %v2165
        %v2181 = vpack.c.b16 %v2168, %v2167
        %v2182 = vpack.c.b16 %v2170, %v2169
        %v2183 = vpack.c.b16 %v2172, %v2171
        %v2184 = vpack.c.b16 %v2174, %v2173
        %v2185 = vpack.c.b16 %v2176, %v2175
        %v2186 = vpack.c.b16 %v2178, %v2177
        %2195 = vmatprep.subr.bf16.mxu0 0
        %2196 = vmatpush1.bf16.msra.mxu0 %v2179
        %2197 = vmatprep.subr.bf16.mxu0 0
        %2198 = vmatpush1.bf16.msra.mxu0 %v2180
        %2199 = vmatprep.subr.bf16.mxu0 0
        %2200 = vmatpush1.bf16.msra.mxu0 %v2181
        %2201 = vmatprep.subr.bf16.mxu0 0
        %2202 = vmatpush1.bf16.msra.mxu0 %v2182
        %2203 = vmatprep.subr.bf16.mxu0 0
        %2204 = vmatpush1.bf16.msra.mxu0 %v2183
        %2205 = vmatprep.subr.bf16.mxu0 0
        %2206 = vmatpush1.bf16.msra.mxu0 %v2184
        %2207 = vmatprep.subr.bf16.mxu0 0
        %2208 = vmatpush1.bf16.msra.mxu0 %v2185
        %2209 = vmatprep.subr.bf16.mxu0 0
        %2210 = vmatpush1.bf16.msra.mxu0 %v2186
        %2211 = vmatprep.subr.bf16.mxu0 0
        %2212 = vmatpush1.bf16.msra.mxu0 0
        %2213 = vmatprep.subr.bf16.mxu0 0
        %2214 = vmatpush1.bf16.msra.mxu0 0
        %2215 = vmatprep.subr.bf16.mxu0 0
        %2216 = vmatpush1.bf16.msra.mxu0 0
        %2217 = vmatprep.subr.bf16.mxu0 0
        %2218 = vmatpush1.bf16.msra.mxu0 0
        %2219 = vmatprep.subr.bf16.mxu0 0
        %2220 = vmatpush1.bf16.msra.mxu0 0
        %2221 = vmatprep.subr.bf16.mxu0 0
        %2222 = vmatpush1.bf16.msra.mxu0 0
        %2223 = vmatprep.subr.bf16.mxu0 0
        %2224 = vmatpush1.bf16.msra.mxu0 0
        %2225 = vmatprep.subr.bf16.mxu0 0
        %2226 = vmatpush1.bf16.msra.mxu0 0
        %2227 = vmatprep.mubr.bf16.mxu0 0
        %2228 = vmatmul.mubr.bf16.gmra.mrb[0].mxu0 %v2145
        %v2229 = vpop.f32.mrb[0].mxu0
        %v2230 = vadd.f32 %v2090, %v2229
        %v2231 = vpop.f32.mrb[0].mxu0
        %v2232 = vpop.f32.mrb[0].mxu0
        %v2233 = vadd.f32 %v2090, %v2232
        %v2234 = vpop.f32.mrb[0].mxu0
        %2235 = vdwg.mxu0
        %2236 = vst [vmem:[%s247] sm:$0xff] %v2230
        %2237 = vst [vmem:[%s247 + $0x8] sm:$0xff] %v2233
        %s2238 = sand.u32 %s159, 1
        %s2239 = scalar_lea.sflag [#allocation3], %s2238
        %s2240 = sand.u32 %s159, 1
        %s2241 = smul.addr %s2240, 16
        %s2242 = scalar_lea.vmem [#allocation2], %s2241
        // Predicated region
        $region45: #{tpu_custom_call.1} parent=43 // pred_check
          %p2243 = pneg %p169
        $region46: #{tpu_custom_call.1} parent=43 // pred_check_branch
          %2245 = sbr.rel (%p2243) target = $region48
        $region47: #{tpu_custom_call.1} parent=43 // pred_region
          %s2246 = smul.u32 2, %s20
          %s2248 = ssub.s32 256, 256
          %2249 = vsyncadd %s2239, %s2248
          %s2250 = smul.addr %s2246, 128
          %s2251 = scalar_lea.hbm %s6, %s2250
          %s2252 = sshll.u32 %s2242, 4
          %s2253 = int_to_ptr.vmem [resolvable:$true] %s2252
          %2258 = dma.vmem_to_hbm [thread:$0]  %s2253, 256, %s2251, %s2239, 128, 128, 8
        $region48: #{tpu_custom_call.1} parent=43 // pred_fallthru
          _
      $region44: #{tpu_custom_call.1} parent=5 // pred_fallthru
        _
      %p2259 = scmp.le.s32.totalorder 2, %s15
      // Predicated region
      $region49: #{tpu_custom_call.1} parent=5 // pred_check
        %p2260 = pneg %p2259
      $region50: #{tpu_custom_call.1} parent=5 // pred_check_branch
        %2262 = sbr.rel (%p2260) target = $region52
      $region51: #{tpu_custom_call.1} parent=5 // pred_region
        %s2263 = ssub.s32 %s15, 2
        // Predicated region
        $region53: #{tpu_custom_call.1} parent=51 // pred_check
          %p2264 = pneg %p175
        $region54: #{tpu_custom_call.1} parent=51 // pred_check_branch
          %2266 = sbr.rel (%p2264) target = $region56
        $region55: #{tpu_custom_call.1} parent=51 // pred_region
          %s2267 = sand.u32 %s160, 1
          %s2268 = scalar_lea.sflag [#allocation3], %s2267
          %s2269 = sand.u32 %s160, 1
          %s2270 = smul.addr %s2269, 16
          %s2271 = scalar_lea.vmem [#allocation2], %s2270
          %2272 = dma.done %s2268, 256
        $region56: #{tpu_custom_call.1} parent=51 // pred_fallthru
          _
      $region52: #{tpu_custom_call.1} parent=5 // pred_fallthru
        _
    $region6: #{tpu_custom_call.1} parent=1 // loop_footer
      %s19 = sadd.s32 1, %s15
    $region7: #{tpu_custom_call.1} parent=1 // loop_footer_branch
      %14 = sbr.rel target = $region3
    $region8: #{tpu_custom_call.1} parent=1 // loop_exit
      _
    %2273 = vsyncpa [#allocation3], 1
    %s2274 = scalar_lea.sflag [#allocation3], 1
    %2275 = vsyncpa %s2274, 1

</llo_original>
